<compile_context>
chip_gen: v7x
topology: tpu7x:2x2x1
jax: 0.10.0
libtpu: 0.0.40
codegen_flags: <defaults>
</compile_context>

<pallas_src>
import functools

import jax
import jax.numpy as jnp
from jax.experimental import pallas as pl
from jax.experimental.pallas import tpu as pltpu


# ----------------------------------------------------------------------------- helpers


def _rup(n, m):
    return ((n + m - 1) // m) * m


def _pad2d(a, shape, dtype):
    out = jnp.zeros(shape, dtype)
    return out.at[: a.shape[0], : a.shape[1]].set(a.astype(dtype))


# ----------------------------------------------------------------------------- kernel


def decoder_kernel(ids_ref,      # SMEM (Bp,) int32           [scalar prefetch]
                   h_ref,        # VMEM (Bp, Hp)   f32        previous hidden state
                   emb_hbm,      # HBM  (V,  Ep)   f32        embedding table (bf16-rounded values)
                   w_i_ref,      # VMEM (Ep, 3Hp)  bf16       [W_ir | W_iz | W_in]^T, 128-aligned gates
                   b_i_ref,      # VMEM (1,  3Hp)  f32        b_ih
                   w_h_ref,      # VMEM (Hp, 3Hp)  bf16       [W_hr | W_hz | W_hn]^T
                   b_h_ref,      # VMEM (1,  3Hp)  f32        b_hh
                   w_out_ref,    # VMEM (Hp, To)   bf16       fc_out weight^T, vocab tile j
                   b_out_ref,    # VMEM (1,  To)   f32        fc_out bias, vocab tile j
                   pred_ref,     # VMEM out (Bp, To) f32      logits tile (lane-dense)
                   hnew_ref,     # VMEM out (Bp, Hp) f32      new hidden state
                   x_scr,        # VMEM scratch (Bp, Ep) f32  gathered embeddings
                   h_scr,        # VMEM scratch (Bp, Hp) f32  h_new carried across vocab tiles
                   dma_sem):     # DMA semaphores (Bp,)
    Bp, Hp = h_ref.shape

    # GRU step + embedding gather run once (first vocab tile); result persists in h_scr.
    @pl.when(pl.program_id(0) == 0)
    def _gru_step():
        # --- embedding gather: DMA one row per (padded) batch element from HBM ---
        copies = []
        for b in range(Bp):                       # Bp is tiny and static (8)
            idx = ids_ref[b]                      # padded ids are 0 -> always in range
            copies.append(pltpu.make_async_copy(
                emb_hbm.at[pl.ds(idx, 1), :], x_scr.at[pl.ds(b, 1), :], dma_sem.at[b]))
        for c in copies:
            c.start()
        for c in copies:
            c.wait()

        # dropout: eval-mode identity (single-layer nn.GRU dropout is a no-op anyway)
        x = x_scr[...].astype(jnp.bfloat16)       # (Bp, Ep)  values already bf16-rounded
        h = h_ref[...]                            # (Bp, Hp)  f32

        # Two MXU pushes: gi over K=Ep, gh over K=Hp (includes the W_hn columns).
        gi = jnp.dot(x, w_i_ref[...], preferred_element_type=jnp.float32) + b_i_ref[...]
        gh = jnp.dot(h.astype(jnp.bfloat16), w_h_ref[...],
                     preferred_element_type=jnp.float32) + b_h_ref[...]

        # 128-lane-aligned gate slices; elementwise math stays f32 (v5e has no bf16 VPU/EUP).
        r = jax.nn.sigmoid(gi[:, :Hp] + gh[:, :Hp])
        z = jax.nn.sigmoid(gi[:, Hp:2 * Hp] + gh[:, Hp:2 * Hp])
        n = jnp.tanh(gi[:, 2 * Hp:] + r * gh[:, 2 * Hp:])
        h_scr[...] = (1.0 - z) * n + z * h

    # New hidden state (same resident output block every step; tiny 4 KiB store).
    hnew_ref[...] = h_scr[...]

    # --- fc_out vocab tile: (Bp, Hp) @ (Hp, To), double-buffered w_out tile DMA ---
    pred_ref[...] = jnp.dot(h_scr[...].astype(jnp.bfloat16), w_out_ref[...],
                            preferred_element_type=jnp.float32) + b_out_ref[...]


# ----------------------------------------------------------------------------- packing


def pack_params(params, batch):
    """Pad / transpose the PyTorch-shaped parameters into the kernel layout (call ONCE)."""
    emb = params["embedding"]      # (V, E)
    w_ih = params["w_ih"]          # (3H, E)   gate order r, z, n
    w_hh = params["w_hh"]          # (3H, H)
    b_ih = params["b_ih"]          # (3H,)
    b_hh = params["b_hh"]          # (3H,)
    w_out = params["w_out"]        # (O, H)
    b_out = params["b_out"]        # (O,)

    V, E = emb.shape
    H = w_hh.shape[1]
    O = w_out.shape[0]
    Bp, Ep, Hp, Op = _rup(batch, 8), _rup(E, 128), _rup(H, 128), _rup(O, 128)

    bf16 = jnp.bfloat16

    def pack_gates(w, b, k, kp):
        """(3H, k) weight + (3H,) bias -> (kp, 3Hp) bf16 + (1, 3Hp) f32, gates 128-aligned."""
        wp = jnp.zeros((kp, 3 * Hp), bf16)
        bp = jnp.zeros((1, 3 * Hp), jnp.float32)
        for g in range(3):
            wp = wp.at[:k, g * Hp:g * Hp + H].set(w[g * H:(g + 1) * H].T.astype(bf16))
            bp = bp.at[0, g * Hp:g * Hp + H].set(b[g * H:(g + 1) * H])
        return wp, bp

    w_i, b_i = pack_gates(w_ih, b_ih, E, Ep)
    w_h, b_h = pack_gates(w_hh, b_hh, H, Hp)

    packed = {
        # Table stays in HBM (rows un-padded); rows pre-rounded to bf16 but stored f32 so each
        # gathered row is a dense 32-bit sublane DMA write.
        "emb": _pad2d(emb.astype(bf16).astype(jnp.float32), (V, Ep), jnp.float32),
        "w_i": w_i, "b_i": b_i,
        "w_h": w_h, "b_h": b_h,
        "w_out": _pad2d(w_out.T, (Hp, Op), bf16),
        "b_out": _pad2d(b_out[None, :], (1, Op), jnp.float32),
    }
    dims = dict(B=batch, V=V, E=E, H=H, O=O, Bp=Bp, Ep=Ep, Hp=Hp, Op=Op)
    return packed, dims


# ----------------------------------------------------------------------------- wrapper


def build_decoder(params, batch, tile_o=None):
    """Pack weights once, return a jitted forward(token_ids (B,), hidden (1,B,H))."""
    packed, d = pack_params(params, batch)
    Bp, Ep, Hp, Op = d["Bp"], d["Ep"], d["Hp"], d["Op"]
    B, H, O = d["B"], d["H"], d["O"]

    if tile_o is None:
        # v7x (64 MiB VMEM): keep 2 (double buffer) * Hp*tile_o*2B well under scoped VMEM;
        # v5e/v6e can use larger tiles (4096-8192) to amortize per-grid-step overhead.
        tile_o = Op if Op <= 2048 else 2048
    assert tile_o % 128 == 0 and Op % tile_o == 0
    grid = (Op // tile_o,)

    const = lambda j, ids: (0, 0)   # resident across the whole grid
    vtile = lambda j, ids: (0, j)   # streamed vocab tile

    call = pl.pallas_call(
        decoder_kernel,
        out_shape=(jax.ShapeDtypeStruct((Bp, Op), jnp.float32),
                   jax.ShapeDtypeStruct((Bp, Hp), jnp.float32)),
        grid_spec=pltpu.PrefetchScalarGridSpec(
            num_scalar_prefetch=1,                      # token ids -> SMEM, visible to index_maps
            grid=grid,
            in_specs=[
                pl.BlockSpec((Bp, Hp), const),          # h
                pl.BlockSpec(memory_space=pl.ANY),      # embedding table (HBM, manual gather)
                pl.BlockSpec((Ep, 3 * Hp), const),      # W_i^T
                pl.BlockSpec((1, 3 * Hp), const),       # b_ih
                pl.BlockSpec((Hp, 3 * Hp), const),      # W_hh^T
                pl.BlockSpec((1, 3 * Hp), const),       # b_hh
                pl.BlockSpec((Hp, tile_o), vtile),      # fc_out weight^T, vocab tile
                pl.BlockSpec((1, tile_o), vtile),       # fc_out bias, vocab tile
            ],
            out_specs=(pl.BlockSpec((Bp, tile_o), vtile),   # logits (lane-dense tiles)
                       pl.BlockSpec((Bp, Hp), const)),      # new hidden state
            scratch_shapes=[
                pltpu.VMEM((Bp, Ep), jnp.float32),          # gathered embeddings
                pltpu.VMEM((Bp, Hp), jnp.float32),          # h_new carried across vocab tiles
                pltpu.SemaphoreType.DMA((Bp,)),
            ]),
        compiler_params=pltpu.CompilerParams(
            # "arbitrary": later vocab tiles consume the h_new scratch written at step 0.
            dimension_semantics=("arbitrary",),
            vmem_limit_bytes=32 * 1024 * 1024),
    )

    @jax.jit
    def forward(token_ids, hidden):
        ids_p = jnp.zeros((Bp,), jnp.int32).at[:B].set(token_ids.astype(jnp.int32))
        h_p = _pad2d(hidden[0], (Bp, Hp), jnp.float32)
        pred_p, hnew_p = call(ids_p, h_p,
                              packed["emb"], packed["w_i"], packed["b_i"],
                              packed["w_h"], packed["b_h"],
                              packed["w_out"], packed["b_out"])
        return pred_p[:B, :O], hnew_p[:B, :H][None]     # restore (1, B, H) like nn.GRU

    return forward


# ----------------------------------------------------------------------------- reference


def reference_forward(token_ids, hidden, params):
    """Pure-JAX reference mirroring the kernel's mixed precision (bf16 weights, f32 accum)."""
    bf = lambda a: a.astype(jnp.bfloat16).astype(jnp.float32)
    H = hidden.shape[-1]
    emb = bf(params["embedding"])[token_ids]                    # (B, E)
    h = hidden[0]
    gi = bf(emb) @ bf(params["w_ih"]).T + params["b_ih"]
    gh = bf(h) @ bf(params["w_hh"]).T + params["b_hh"]
    r = jax.nn.sigmoid(gi[:, :H] + gh[:, :H])
    z = jax.nn.sigmoid(gi[:, H:2 * H] + gh[:, H:2 * H])
    n = jnp.tanh(gi[:, 2 * H:] + r * gh[:, 2 * H:])
    h_new = (1.0 - z) * n + z * h
    pred = bf(h_new) @ bf(params["w_out"]).T + params["b_out"]
    return pred, h_new[None]


def init_params(key, output_dim, embedding_dim, hidden_size):
    """Deterministic init with the natural nn.Embedding / nn.GRU / nn.Linear shapes."""
    ks = jax.random.split(key, 7)
    s = 1.0 / jnp.sqrt(hidden_size)
    return {
        "embedding": jax.random.normal(ks[0], (output_dim, embedding_dim), jnp.float32),
        "w_ih": jax.random.uniform(ks[1], (3 * hidden_size, embedding_dim), jnp.float32, -s, s),
        "w_hh": jax.random.uniform(ks[2], (3 * hidden_size, hidden_size), jnp.float32, -s, s),
        "b_ih": jax.random.uniform(ks[3], (3 * hidden_size,), jnp.float32, -s, s),
        "b_hh": jax.random.uniform(ks[4], (3 * hidden_size,), jnp.float32, -s, s),
        "w_out": jax.random.uniform(ks[5], (output_dim, hidden_size), jnp.float32, -s, s),
        "b_out": jax.random.uniform(ks[6], (output_dim,), jnp.float32, -s, s),
    }


if __name__ == "__main__":
    BATCH = 2
    OUTPUT_DIM = 160     # target-side vocab size; pads to 256 lanes -> exercises 2 fc_out tiles
    EMBEDDING_DIM = 32
    HIDDEN_SIZE = 32

    key = jax.random.PRNGKey(0)
    k_param, k_tok, k_hid = jax.random.split(key, 3)

    params = init_params(k_param, OUTPUT_DIM, EMBEDDING_DIM, HIDDEN_SIZE)
    token_ids = jax.random.randint(k_tok, (BATCH,), 0, OUTPUT_DIM, dtype=jnp.int32)
    hidden = jax.random.normal(k_hid, (1, BATCH, HIDDEN_SIZE), jnp.float32)

    # Pack weights once (hoisted out of the forward path), jit the padded call.
    forward = build_decoder(params, BATCH, tile_o=128)

    pred, h_new = jax.block_until_ready(forward(token_ids, hidden))

    pred_ref, h_ref = reference_forward(token_ids, hidden, params)
    assert pred.shape == (BATCH, OUTPUT_DIM)
    assert h_new.shape == (1, BATCH, HIDDEN_SIZE)
    assert jnp.allclose(pred, pred_ref, atol=5e-3, rtol=5e-3), \
        float(jnp.max(jnp.abs(pred - pred_ref)))
    assert jnp.allclose(h_new, h_ref, atol=5e-3, rtol=5e-3), \
        float(jnp.max(jnp.abs(h_new - h_ref)))

    print("KERNEL_OK")
</pallas_src>

<mosaic_0001>
module attributes {stable_mosaic.version = 11 : i64} {
  func.func @decoder_kernel(%arg0: i32, %arg1: memref<8xi32, #tpu.memory_space<smem>>, %arg2: memref<8x128xf32, #tpu.memory_space<vmem>>, %arg3: memref<160x128xf32, #tpu.memory_space<any>>, %arg4: memref<128x384xbf16, #tpu.memory_space<vmem>>, %arg5: memref<1x384xf32, #tpu.memory_space<vmem>>, %arg6: memref<128x384xbf16, #tpu.memory_space<vmem>>, %arg7: memref<1x384xf32, #tpu.memory_space<vmem>>, %arg8: memref<128x128xbf16, #tpu.memory_space<vmem>>, %arg9: memref<1x128xf32, #tpu.memory_space<vmem>>, %arg10: memref<8x128xf32, #tpu.memory_space<vmem>>, %arg11: memref<8x128xf32, #tpu.memory_space<vmem>>, %arg12: memref<8x128xf32, #tpu.memory_space<vmem>>, %arg13: memref<8x128xf32, #tpu.memory_space<vmem>>, %arg14: memref<8x!tpu.dma_semaphore, #tpu.memory_space<semaphore_mem>>) attributes {dimension_semantics = [#tpu.dimension_semantics<arbitrary>], iteration_bounds = array<i64: 2>, scalar_prefetch = 1 : i64, scratch_operands = 3 : i64, tpu.core_type = #tpu.core_type<tc>, window_params = [{pipeline_mode = #tpu.pipeline_mode<synchronous>, transform_indices = @transform_0, window_bounds = array<i64: 8, 128>}, {}, {pipeline_mode = #tpu.pipeline_mode<synchronous>, transform_indices = @transform_2, window_bounds = array<i64: 128, 384>}, {pipeline_mode = #tpu.pipeline_mode<synchronous>, transform_indices = @transform_3, window_bounds = array<i64: 1, 384>}, {pipeline_mode = #tpu.pipeline_mode<synchronous>, transform_indices = @transform_4, window_bounds = array<i64: 128, 384>}, {pipeline_mode = #tpu.pipeline_mode<synchronous>, transform_indices = @transform_5, window_bounds = array<i64: 1, 384>}, {transform_indices = @transform_6, window_bounds = array<i64: 128, 128>}, {transform_indices = @transform_7, window_bounds = array<i64: 1, 128>}, {transform_indices = @transform_8, window_bounds = array<i64: 8, 128>}, {pipeline_mode = #tpu.pipeline_mode<synchronous>, transform_indices = @transform_9, window_bounds = array<i64: 8, 128>}]} {
    %c0_i32 = arith.constant 0 : i32
    %0 = arith.cmpi eq, %arg0, %c0_i32 : i32
    %1 = arith.extui %0 : i1 to i32
    %c0_i32_0 = arith.constant 0 : i32
    %2 = arith.cmpi ne, %1, %c0_i32_0 : i32
    scf.if %2 {
      %c0_12 = arith.constant 0 : index
      %13 = memref.load %arg1[%c0_12] : memref<8xi32, #tpu.memory_space<smem>>
      %c1 = arith.constant 1 : index
      %14 = memref.load %arg1[%c1] : memref<8xi32, #tpu.memory_space<smem>>
      %c2 = arith.constant 2 : index
      %15 = memref.load %arg1[%c2] : memref<8xi32, #tpu.memory_space<smem>>
      %c3 = arith.constant 3 : index
      %16 = memref.load %arg1[%c3] : memref<8xi32, #tpu.memory_space<smem>>
      %c4 = arith.constant 4 : index
      %17 = memref.load %arg1[%c4] : memref<8xi32, #tpu.memory_space<smem>>
      %c5 = arith.constant 5 : index
      %18 = memref.load %arg1[%c5] : memref<8xi32, #tpu.memory_space<smem>>
      %c6 = arith.constant 6 : index
      %19 = memref.load %arg1[%c6] : memref<8xi32, #tpu.memory_space<smem>>
      %c7 = arith.constant 7 : index
      %20 = memref.load %arg1[%c7] : memref<8xi32, #tpu.memory_space<smem>>
      %c0_i32_13 = arith.constant 0 : i32
      %c0_i32_14 = arith.constant 0 : i32
      %21 = tpu.memref_slice %arg3[%13, %c0_i32_14] : memref<160x128xf32, #tpu.memory_space<any>> -> memref<1x128xf32, #tpu.memory_space<any>>
      %c0_i32_15 = arith.constant 0 : i32
      %c0_i32_16 = arith.constant 0 : i32
      %22 = tpu.memref_slice %arg12[%c0_i32_15, %c0_i32_16] : memref<8x128xf32, #tpu.memory_space<vmem>> -> memref<1x128xf32, #tpu.memory_space<vmem>>
      %23 = tpu.memref_slice %arg14[%c0_i32_13] : memref<8x!tpu.dma_semaphore, #tpu.memory_space<semaphore_mem>> -> memref<1x!tpu.dma_semaphore, #tpu.memory_space<semaphore_mem>>
      %24 = tpu.memref_squeeze %23 : memref<1x!tpu.dma_semaphore, #tpu.memory_space<semaphore_mem>> -> memref<!tpu.dma_semaphore, #tpu.memory_space<semaphore_mem>>
      tpu.enqueue_dma source(%21 : memref<1x128xf32, #tpu.memory_space<any>>) target(%22 : memref<1x128xf32, #tpu.memory_space<vmem>>) target_semaphore(%24 : memref<!tpu.dma_semaphore, #tpu.memory_space<semaphore_mem>>)
      %c1_i32 = arith.constant 1 : i32
      %c0_i32_17 = arith.constant 0 : i32
      %25 = tpu.memref_slice %arg3[%14, %c0_i32_17] : memref<160x128xf32, #tpu.memory_space<any>> -> memref<1x128xf32, #tpu.memory_space<any>>
      %c1_i32_18 = arith.constant 1 : i32
      %c0_i32_19 = arith.constant 0 : i32
      %26 = tpu.memref_slice %arg12[%c1_i32_18, %c0_i32_19] : memref<8x128xf32, #tpu.memory_space<vmem>> -> memref<1x128xf32, #tpu.memory_space<vmem>>
      %27 = tpu.memref_slice %arg14[%c1_i32] : memref<8x!tpu.dma_semaphore, #tpu.memory_space<semaphore_mem>> -> memref<1x!tpu.dma_semaphore, #tpu.memory_space<semaphore_mem>>
      %28 = tpu.memref_squeeze %27 : memref<1x!tpu.dma_semaphore, #tpu.memory_space<semaphore_mem>> -> memref<!tpu.dma_semaphore, #tpu.memory_space<semaphore_mem>>
      tpu.enqueue_dma source(%25 : memref<1x128xf32, #tpu.memory_space<any>>) target(%26 : memref<1x128xf32, #tpu.memory_space<vmem>>) target_semaphore(%28 : memref<!tpu.dma_semaphore, #tpu.memory_space<semaphore_mem>>)
      %c2_i32 = arith.constant 2 : i32
      %c0_i32_20 = arith.constant 0 : i32
      %29 = tpu.memref_slice %arg3[%15, %c0_i32_20] : memref<160x128xf32, #tpu.memory_space<any>> -> memref<1x128xf32, #tpu.memory_space<any>>
      %c2_i32_21 = arith.constant 2 : i32
      %c0_i32_22 = arith.constant 0 : i32
      %30 = tpu.memref_slice %arg12[%c2_i32_21, %c0_i32_22] : memref<8x128xf32, #tpu.memory_space<vmem>> -> memref<1x128xf32, #tpu.memory_space<vmem>>
      %31 = tpu.memref_slice %arg14[%c2_i32] : memref<8x!tpu.dma_semaphore, #tpu.memory_space<semaphore_mem>> -> memref<1x!tpu.dma_semaphore, #tpu.memory_space<semaphore_mem>>
      %32 = tpu.memref_squeeze %31 : memref<1x!tpu.dma_semaphore, #tpu.memory_space<semaphore_mem>> -> memref<!tpu.dma_semaphore, #tpu.memory_space<semaphore_mem>>
      tpu.enqueue_dma source(%29 : memref<1x128xf32, #tpu.memory_space<any>>) target(%30 : memref<1x128xf32, #tpu.memory_space<vmem>>) target_semaphore(%32 : memref<!tpu.dma_semaphore, #tpu.memory_space<semaphore_mem>>)
      %c3_i32 = arith.constant 3 : i32
      %c0_i32_23 = arith.constant 0 : i32
      %33 = tpu.memref_slice %arg3[%16, %c0_i32_23] : memref<160x128xf32, #tpu.memory_space<any>> -> memref<1x128xf32, #tpu.memory_space<any>>
      %c3_i32_24 = arith.constant 3 : i32
      %c0_i32_25 = arith.constant 0 : i32
      %34 = tpu.memref_slice %arg12[%c3_i32_24, %c0_i32_25] : memref<8x128xf32, #tpu.memory_space<vmem>> -> memref<1x128xf32, #tpu.memory_space<vmem>>
      %35 = tpu.memref_slice %arg14[%c3_i32] : memref<8x!tpu.dma_semaphore, #tpu.memory_space<semaphore_mem>> -> memref<1x!tpu.dma_semaphore, #tpu.memory_space<semaphore_mem>>
      %36 = tpu.memref_squeeze %35 : memref<1x!tpu.dma_semaphore, #tpu.memory_space<semaphore_mem>> -> memref<!tpu.dma_semaphore, #tpu.memory_space<semaphore_mem>>
      tpu.enqueue_dma source(%33 : memref<1x128xf32, #tpu.memory_space<any>>) target(%34 : memref<1x128xf32, #tpu.memory_space<vmem>>) target_semaphore(%36 : memref<!tpu.dma_semaphore, #tpu.memory_space<semaphore_mem>>)
      %c4_i32 = arith.constant 4 : i32
      %c0_i32_26 = arith.constant 0 : i32
      %37 = tpu.memref_slice %arg3[%17, %c0_i32_26] : memref<160x128xf32, #tpu.memory_space<any>> -> memref<1x128xf32, #tpu.memory_space<any>>
      %c4_i32_27 = arith.constant 4 : i32
      %c0_i32_28 = arith.constant 0 : i32
      %38 = tpu.memref_slice %arg12[%c4_i32_27, %c0_i32_28] : memref<8x128xf32, #tpu.memory_space<vmem>> -> memref<1x128xf32, #tpu.memory_space<vmem>>
      %39 = tpu.memref_slice %arg14[%c4_i32] : memref<8x!tpu.dma_semaphore, #tpu.memory_space<semaphore_mem>> -> memref<1x!tpu.dma_semaphore, #tpu.memory_space<semaphore_mem>>
      %40 = tpu.memref_squeeze %39 : memref<1x!tpu.dma_semaphore, #tpu.memory_space<semaphore_mem>> -> memref<!tpu.dma_semaphore, #tpu.memory_space<semaphore_mem>>
      tpu.enqueue_dma source(%37 : memref<1x128xf32, #tpu.memory_space<any>>) target(%38 : memref<1x128xf32, #tpu.memory_space<vmem>>) target_semaphore(%40 : memref<!tpu.dma_semaphore, #tpu.memory_space<semaphore_mem>>)
      %c5_i32 = arith.constant 5 : i32
      %c0_i32_29 = arith.constant 0 : i32
      %41 = tpu.memref_slice %arg3[%18, %c0_i32_29] : memref<160x128xf32, #tpu.memory_space<any>> -> memref<1x128xf32, #tpu.memory_space<any>>
      %c5_i32_30 = arith.constant 5 : i32
      %c0_i32_31 = arith.constant 0 : i32
      %42 = tpu.memref_slice %arg12[%c5_i32_30, %c0_i32_31] : memref<8x128xf32, #tpu.memory_space<vmem>> -> memref<1x128xf32, #tpu.memory_space<vmem>>
      %43 = tpu.memref_slice %arg14[%c5_i32] : memref<8x!tpu.dma_semaphore, #tpu.memory_space<semaphore_mem>> -> memref<1x!tpu.dma_semaphore, #tpu.memory_space<semaphore_mem>>
      %44 = tpu.memref_squeeze %43 : memref<1x!tpu.dma_semaphore, #tpu.memory_space<semaphore_mem>> -> memref<!tpu.dma_semaphore, #tpu.memory_space<semaphore_mem>>
      tpu.enqueue_dma source(%41 : memref<1x128xf32, #tpu.memory_space<any>>) target(%42 : memref<1x128xf32, #tpu.memory_space<vmem>>) target_semaphore(%44 : memref<!tpu.dma_semaphore, #tpu.memory_space<semaphore_mem>>)
      %c6_i32 = arith.constant 6 : i32
      %c0_i32_32 = arith.constant 0 : i32
      %45 = tpu.memref_slice %arg3[%19, %c0_i32_32] : memref<160x128xf32, #tpu.memory_space<any>> -> memref<1x128xf32, #tpu.memory_space<any>>
      %c6_i32_33 = arith.constant 6 : i32
      %c0_i32_34 = arith.constant 0 : i32
      %46 = tpu.memref_slice %arg12[%c6_i32_33, %c0_i32_34] : memref<8x128xf32, #tpu.memory_space<vmem>> -> memref<1x128xf32, #tpu.memory_space<vmem>>
      %47 = tpu.memref_slice %arg14[%c6_i32] : memref<8x!tpu.dma_semaphore, #tpu.memory_space<semaphore_mem>> -> memref<1x!tpu.dma_semaphore, #tpu.memory_space<semaphore_mem>>
      %48 = tpu.memref_squeeze %47 : memref<1x!tpu.dma_semaphore, #tpu.memory_space<semaphore_mem>> -> memref<!tpu.dma_semaphore, #tpu.memory_space<semaphore_mem>>
      tpu.enqueue_dma source(%45 : memref<1x128xf32, #tpu.memory_space<any>>) target(%46 : memref<1x128xf32, #tpu.memory_space<vmem>>) target_semaphore(%48 : memref<!tpu.dma_semaphore, #tpu.memory_space<semaphore_mem>>)
      %c7_i32 = arith.constant 7 : i32
      %c0_i32_35 = arith.constant 0 : i32
      %49 = tpu.memref_slice %arg3[%20, %c0_i32_35] : memref<160x128xf32, #tpu.memory_space<any>> -> memref<1x128xf32, #tpu.memory_space<any>>
      %c7_i32_36 = arith.constant 7 : i32
      %c0_i32_37 = arith.constant 0 : i32
      %50 = tpu.memref_slice %arg12[%c7_i32_36, %c0_i32_37] : memref<8x128xf32, #tpu.memory_space<vmem>> -> memref<1x128xf32, #tpu.memory_space<vmem>>
      %51 = tpu.memref_slice %arg14[%c7_i32] : memref<8x!tpu.dma_semaphore, #tpu.memory_space<semaphore_mem>> -> memref<1x!tpu.dma_semaphore, #tpu.memory_space<semaphore_mem>>
      %52 = tpu.memref_squeeze %51 : memref<1x!tpu.dma_semaphore, #tpu.memory_space<semaphore_mem>> -> memref<!tpu.dma_semaphore, #tpu.memory_space<semaphore_mem>>
      tpu.enqueue_dma source(%49 : memref<1x128xf32, #tpu.memory_space<any>>) target(%50 : memref<1x128xf32, #tpu.memory_space<vmem>>) target_semaphore(%52 : memref<!tpu.dma_semaphore, #tpu.memory_space<semaphore_mem>>)
      %c0_i32_38 = arith.constant 0 : i32
      %c0_i32_39 = arith.constant 0 : i32
      %53 = tpu.memref_slice %arg3[%13, %c0_i32_39] : memref<160x128xf32, #tpu.memory_space<any>> -> memref<1x128xf32, #tpu.memory_space<any>>
      %c0_i32_40 = arith.constant 0 : i32
      %c0_i32_41 = arith.constant 0 : i32
      %54 = tpu.memref_slice %arg12[%c0_i32_40, %c0_i32_41] : memref<8x128xf32, #tpu.memory_space<vmem>> -> memref<1x128xf32, #tpu.memory_space<vmem>>
      %55 = tpu.memref_slice %arg14[%c0_i32_38] : memref<8x!tpu.dma_semaphore, #tpu.memory_space<semaphore_mem>> -> memref<1x!tpu.dma_semaphore, #tpu.memory_space<semaphore_mem>>
      %56 = tpu.memref_squeeze %55 : memref<1x!tpu.dma_semaphore, #tpu.memory_space<semaphore_mem>> -> memref<!tpu.dma_semaphore, #tpu.memory_space<semaphore_mem>>
      tpu.wait_dma2 semaphore(%56 : memref<!tpu.dma_semaphore, #tpu.memory_space<semaphore_mem>>) src(%53 : memref<1x128xf32, #tpu.memory_space<any>>) dst(%54 : memref<1x128xf32, #tpu.memory_space<vmem>>)
      %c1_i32_42 = arith.constant 1 : i32
      %c0_i32_43 = arith.constant 0 : i32
      %57 = tpu.memref_slice %arg3[%14, %c0_i32_43] : memref<160x128xf32, #tpu.memory_space<any>> -> memref<1x128xf32, #tpu.memory_space<any>>
      %c1_i32_44 = arith.constant 1 : i32
      %c0_i32_45 = arith.constant 0 : i32
      %58 = tpu.memref_slice %arg12[%c1_i32_44, %c0_i32_45] : memref<8x128xf32, #tpu.memory_space<vmem>> -> memref<1x128xf32, #tpu.memory_space<vmem>>
      %59 = tpu.memref_slice %arg14[%c1_i32_42] : memref<8x!tpu.dma_semaphore, #tpu.memory_space<semaphore_mem>> -> memref<1x!tpu.dma_semaphore, #tpu.memory_space<semaphore_mem>>
      %60 = tpu.memref_squeeze %59 : memref<1x!tpu.dma_semaphore, #tpu.memory_space<semaphore_mem>> -> memref<!tpu.dma_semaphore, #tpu.memory_space<semaphore_mem>>
      tpu.wait_dma2 semaphore(%60 : memref<!tpu.dma_semaphore, #tpu.memory_space<semaphore_mem>>) src(%57 : memref<1x128xf32, #tpu.memory_space<any>>) dst(%58 : memref<1x128xf32, #tpu.memory_space<vmem>>)
      %c2_i32_46 = arith.constant 2 : i32
      %c0_i32_47 = arith.constant 0 : i32
      %61 = tpu.memref_slice %arg3[%15, %c0_i32_47] : memref<160x128xf32, #tpu.memory_space<any>> -> memref<1x128xf32, #tpu.memory_space<any>>
      %c2_i32_48 = arith.constant 2 : i32
      %c0_i32_49 = arith.constant 0 : i32
      %62 = tpu.memref_slice %arg12[%c2_i32_48, %c0_i32_49] : memref<8x128xf32, #tpu.memory_space<vmem>> -> memref<1x128xf32, #tpu.memory_space<vmem>>
      %63 = tpu.memref_slice %arg14[%c2_i32_46] : memref<8x!tpu.dma_semaphore, #tpu.memory_space<semaphore_mem>> -> memref<1x!tpu.dma_semaphore, #tpu.memory_space<semaphore_mem>>
      %64 = tpu.memref_squeeze %63 : memref<1x!tpu.dma_semaphore, #tpu.memory_space<semaphore_mem>> -> memref<!tpu.dma_semaphore, #tpu.memory_space<semaphore_mem>>
      tpu.wait_dma2 semaphore(%64 : memref<!tpu.dma_semaphore, #tpu.memory_space<semaphore_mem>>) src(%61 : memref<1x128xf32, #tpu.memory_space<any>>) dst(%62 : memref<1x128xf32, #tpu.memory_space<vmem>>)
      %c3_i32_50 = arith.constant 3 : i32
      %c0_i32_51 = arith.constant 0 : i32
      %65 = tpu.memref_slice %arg3[%16, %c0_i32_51] : memref<160x128xf32, #tpu.memory_space<any>> -> memref<1x128xf32, #tpu.memory_space<any>>
      %c3_i32_52 = arith.constant 3 : i32
      %c0_i32_53 = arith.constant 0 : i32
      %66 = tpu.memref_slice %arg12[%c3_i32_52, %c0_i32_53] : memref<8x128xf32, #tpu.memory_space<vmem>> -> memref<1x128xf32, #tpu.memory_space<vmem>>
      %67 = tpu.memref_slice %arg14[%c3_i32_50] : memref<8x!tpu.dma_semaphore, #tpu.memory_space<semaphore_mem>> -> memref<1x!tpu.dma_semaphore, #tpu.memory_space<semaphore_mem>>
      %68 = tpu.memref_squeeze %67 : memref<1x!tpu.dma_semaphore, #tpu.memory_space<semaphore_mem>> -> memref<!tpu.dma_semaphore, #tpu.memory_space<semaphore_mem>>
      tpu.wait_dma2 semaphore(%68 : memref<!tpu.dma_semaphore, #tpu.memory_space<semaphore_mem>>) src(%65 : memref<1x128xf32, #tpu.memory_space<any>>) dst(%66 : memref<1x128xf32, #tpu.memory_space<vmem>>)
      %c4_i32_54 = arith.constant 4 : i32
      %c0_i32_55 = arith.constant 0 : i32
      %69 = tpu.memref_slice %arg3[%17, %c0_i32_55] : memref<160x128xf32, #tpu.memory_space<any>> -> memref<1x128xf32, #tpu.memory_space<any>>
      %c4_i32_56 = arith.constant 4 : i32
      %c0_i32_57 = arith.constant 0 : i32
      %70 = tpu.memref_slice %arg12[%c4_i32_56, %c0_i32_57] : memref<8x128xf32, #tpu.memory_space<vmem>> -> memref<1x128xf32, #tpu.memory_space<vmem>>
      %71 = tpu.memref_slice %arg14[%c4_i32_54] : memref<8x!tpu.dma_semaphore, #tpu.memory_space<semaphore_mem>> -> memref<1x!tpu.dma_semaphore, #tpu.memory_space<semaphore_mem>>
      %72 = tpu.memref_squeeze %71 : memref<1x!tpu.dma_semaphore, #tpu.memory_space<semaphore_mem>> -> memref<!tpu.dma_semaphore, #tpu.memory_space<semaphore_mem>>
      tpu.wait_dma2 semaphore(%72 : memref<!tpu.dma_semaphore, #tpu.memory_space<semaphore_mem>>) src(%69 : memref<1x128xf32, #tpu.memory_space<any>>) dst(%70 : memref<1x128xf32, #tpu.memory_space<vmem>>)
      %c5_i32_58 = arith.constant 5 : i32
      %c0_i32_59 = arith.constant 0 : i32
      %73 = tpu.memref_slice %arg3[%18, %c0_i32_59] : memref<160x128xf32, #tpu.memory_space<any>> -> memref<1x128xf32, #tpu.memory_space<any>>
      %c5_i32_60 = arith.constant 5 : i32
      %c0_i32_61 = arith.constant 0 : i32
      %74 = tpu.memref_slice %arg12[%c5_i32_60, %c0_i32_61] : memref<8x128xf32, #tpu.memory_space<vmem>> -> memref<1x128xf32, #tpu.memory_space<vmem>>
      %75 = tpu.memref_slice %arg14[%c5_i32_58] : memref<8x!tpu.dma_semaphore, #tpu.memory_space<semaphore_mem>> -> memref<1x!tpu.dma_semaphore, #tpu.memory_space<semaphore_mem>>
      %76 = tpu.memref_squeeze %75 : memref<1x!tpu.dma_semaphore, #tpu.memory_space<semaphore_mem>> -> memref<!tpu.dma_semaphore, #tpu.memory_space<semaphore_mem>>
      tpu.wait_dma2 semaphore(%76 : memref<!tpu.dma_semaphore, #tpu.memory_space<semaphore_mem>>) src(%73 : memref<1x128xf32, #tpu.memory_space<any>>) dst(%74 : memref<1x128xf32, #tpu.memory_space<vmem>>)
      %c6_i32_62 = arith.constant 6 : i32
      %c0_i32_63 = arith.constant 0 : i32
      %77 = tpu.memref_slice %arg3[%19, %c0_i32_63] : memref<160x128xf32, #tpu.memory_space<any>> -> memref<1x128xf32, #tpu.memory_space<any>>
      %c6_i32_64 = arith.constant 6 : i32
      %c0_i32_65 = arith.constant 0 : i32
      %78 = tpu.memref_slice %arg12[%c6_i32_64, %c0_i32_65] : memref<8x128xf32, #tpu.memory_space<vmem>> -> memref<1x128xf32, #tpu.memory_space<vmem>>
      %79 = tpu.memref_slice %arg14[%c6_i32_62] : memref<8x!tpu.dma_semaphore, #tpu.memory_space<semaphore_mem>> -> memref<1x!tpu.dma_semaphore, #tpu.memory_space<semaphore_mem>>
      %80 = tpu.memref_squeeze %79 : memref<1x!tpu.dma_semaphore, #tpu.memory_space<semaphore_mem>> -> memref<!tpu.dma_semaphore, #tpu.memory_space<semaphore_mem>>
      tpu.wait_dma2 semaphore(%80 : memref<!tpu.dma_semaphore, #tpu.memory_space<semaphore_mem>>) src(%77 : memref<1x128xf32, #tpu.memory_space<any>>) dst(%78 : memref<1x128xf32, #tpu.memory_space<vmem>>)
      %c7_i32_66 = arith.constant 7 : i32
      %c0_i32_67 = arith.constant 0 : i32
      %81 = tpu.memref_slice %arg3[%20, %c0_i32_67] : memref<160x128xf32, #tpu.memory_space<any>> -> memref<1x128xf32, #tpu.memory_space<any>>
      %c7_i32_68 = arith.constant 7 : i32
      %c0_i32_69 = arith.constant 0 : i32
      %82 = tpu.memref_slice %arg12[%c7_i32_68, %c0_i32_69] : memref<8x128xf32, #tpu.memory_space<vmem>> -> memref<1x128xf32, #tpu.memory_space<vmem>>
      %83 = tpu.memref_slice %arg14[%c7_i32_66] : memref<8x!tpu.dma_semaphore, #tpu.memory_space<semaphore_mem>> -> memref<1x!tpu.dma_semaphore, #tpu.memory_space<semaphore_mem>>
      %84 = tpu.memref_squeeze %83 : memref<1x!tpu.dma_semaphore, #tpu.memory_space<semaphore_mem>> -> memref<!tpu.dma_semaphore, #tpu.memory_space<semaphore_mem>>
      tpu.wait_dma2 semaphore(%84 : memref<!tpu.dma_semaphore, #tpu.memory_space<semaphore_mem>>) src(%81 : memref<1x128xf32, #tpu.memory_space<any>>) dst(%82 : memref<1x128xf32, #tpu.memory_space<vmem>>)
      %c0_70 = arith.constant 0 : index
      %c0_71 = arith.constant 0 : index
      %85 = vector.load %arg12[%c0_70, %c0_71] : memref<8x128xf32, #tpu.memory_space<vmem>>, vector<8x128xf32>
      %86 = arith.truncf %85 : vector<8x128xf32> to vector<8x128xbf16>
      %c0_72 = arith.constant 0 : index
      %c0_73 = arith.constant 0 : index
      %87 = vector.load %arg2[%c0_72, %c0_73] : memref<8x128xf32, #tpu.memory_space<vmem>>, vector<8x128xf32>
      %c0_74 = arith.constant 0 : index
      %c0_75 = arith.constant 0 : index
      %88 = vector.load %arg4[%c0_74, %c0_75] : memref<128x384xbf16, #tpu.memory_space<vmem>>, vector<128x384xbf16>
      %cst_76 = arith.constant dense<0.000000e+00> : vector<8x384xf32>
      %89 = tpu.matmul %86, %88, %cst_76 {dimension_numbers = #tpu.dot_dimension_numbers<[1], [0], [0], [1], [0, 0, 1, 1], [], []>} : vector<8x128xbf16>, vector<128x384xbf16>, vector<8x384xf32> -> vector<8x384xf32>
      %c0_77 = arith.constant 0 : index
      %c0_78 = arith.constant 0 : index
      %90 = vector.load %arg5[%c0_77, %c0_78] : memref<1x384xf32, #tpu.memory_space<vmem>>, vector<1x384xf32>
      %91 = vector.broadcast %90 : vector<1x384xf32> to vector<8x384xf32>
      %92 = arith.addf %89, %91 : vector<8x384xf32>
      %93 = arith.truncf %87 : vector<8x128xf32> to vector<8x128xbf16>
      %c0_79 = arith.constant 0 : index
      %c0_80 = arith.constant 0 : index
      %94 = vector.load %arg6[%c0_79, %c0_80] : memref<128x384xbf16, #tpu.memory_space<vmem>>, vector<128x384xbf16>
      %cst_81 = arith.constant dense<0.000000e+00> : vector<8x384xf32>
      %95 = tpu.matmul %93, %94, %cst_81 {dimension_numbers = #tpu.dot_dimension_numbers<[1], [0], [0], [1], [0, 0, 1, 1], [], []>} : vector<8x128xbf16>, vector<128x384xbf16>, vector<8x384xf32> -> vector<8x384xf32>
      %c0_82 = arith.constant 0 : index
      %c0_83 = arith.constant 0 : index
      %96 = vector.load %arg7[%c0_82, %c0_83] : memref<1x384xf32, #tpu.memory_space<vmem>>, vector<1x384xf32>
      %97 = vector.broadcast %96 : vector<1x384xf32> to vector<8x384xf32>
      %98 = arith.addf %95, %97 : vector<8x384xf32>
      %99 = vector.extract_strided_slice %92 {offsets = [0, 0], sizes = [8, 128], strides = [1, 1]} : vector<8x384xf32> to vector<8x128xf32>
      %100 = vector.extract_strided_slice %98 {offsets = [0, 0], sizes = [8, 128], strides = [1, 1]} : vector<8x384xf32> to vector<8x128xf32>
      %101 = arith.addf %99, %100 : vector<8x128xf32>
      %102 = arith.negf %101 : vector<8x128xf32>
      %103 = math.exp %102 : vector<8x128xf32>
      %cst_84 = arith.constant 1.000000e+00 : f32
      %104 = vector.broadcast %cst_84 : f32 to vector<8x128xf32>
      %105 = arith.addf %104, %103 : vector<8x128xf32>
      %106 = arith.divf %104, %105 : vector<8x128xf32>
      %107 = vector.extract_strided_slice %92 {offsets = [0, 128], sizes = [8, 128], strides = [1, 1]} : vector<8x384xf32> to vector<8x128xf32>
      %108 = vector.extract_strided_slice %98 {offsets = [0, 128], sizes = [8, 128], strides = [1, 1]} : vector<8x384xf32> to vector<8x128xf32>
      %109 = arith.addf %107, %108 : vector<8x128xf32>
      %110 = arith.negf %109 : vector<8x128xf32>
      %111 = math.exp %110 : vector<8x128xf32>
      %cst_85 = arith.constant 1.000000e+00 : f32
      %112 = vector.broadcast %cst_85 : f32 to vector<8x128xf32>
      %113 = arith.addf %112, %111 : vector<8x128xf32>
      %114 = arith.divf %112, %113 : vector<8x128xf32>
      %115 = vector.extract_strided_slice %92 {offsets = [0, 256], sizes = [8, 128], strides = [1, 1]} : vector<8x384xf32> to vector<8x128xf32>
      %116 = vector.extract_strided_slice %98 {offsets = [0, 256], sizes = [8, 128], strides = [1, 1]} : vector<8x384xf32> to vector<8x128xf32>
      %117 = arith.mulf %106, %116 : vector<8x128xf32>
      %118 = arith.addf %115, %117 : vector<8x128xf32>
      %119 = math.tanh %118 : vector<8x128xf32>
      %cst_86 = arith.constant 1.000000e+00 : f32
      %120 = vector.broadcast %cst_86 : f32 to vector<8x128xf32>
      %121 = arith.subf %120, %114 : vector<8x128xf32>
      %122 = arith.mulf %121, %119 : vector<8x128xf32>
      %123 = arith.mulf %114, %87 : vector<8x128xf32>
      %124 = arith.addf %122, %123 : vector<8x128xf32>
      %c0_87 = arith.constant 0 : index
      %c0_88 = arith.constant 0 : index
      %125 = vector.load %arg13[%c0_87, %c0_88] : memref<8x128xf32, #tpu.memory_space<vmem>>, vector<8x128xf32>
      tpu.vector_store %arg13[%c0_87, %c0_88], %124 {strides = array<i32>} : memref<8x128xf32, #tpu.memory_space<vmem>>, vector<8x128xf32>,
    } else {
    }
    %c0 = arith.constant 0 : index
    %c0_1 = arith.constant 0 : index
    %3 = vector.load %arg13[%c0, %c0_1] : memref<8x128xf32, #tpu.memory_space<vmem>>, vector<8x128xf32>
    %c0_2 = arith.constant 0 : index
    %c0_3 = arith.constant 0 : index
    %4 = vector.load %arg11[%c0_2, %c0_3] : memref<8x128xf32, #tpu.memory_space<vmem>>, vector<8x128xf32>
    tpu.vector_store %arg11[%c0_2, %c0_3], %3 {strides = array<i32>} : memref<8x128xf32, #tpu.memory_space<vmem>>, vector<8x128xf32>,
    %c0_4 = arith.constant 0 : index
    %c0_5 = arith.constant 0 : index
    %5 = vector.load %arg13[%c0_4, %c0_5] : memref<8x128xf32, #tpu.memory_space<vmem>>, vector<8x128xf32>
    %6 = arith.truncf %5 : vector<8x128xf32> to vector<8x128xbf16>
    %c0_6 = arith.constant 0 : index
    %c0_7 = arith.constant 0 : index
    %7 = vector.load %arg8[%c0_6, %c0_7] : memref<128x128xbf16, #tpu.memory_space<vmem>>, vector<128x128xbf16>
    %cst = arith.constant dense<0.000000e+00> : vector<8x128xf32>
    %8 = tpu.matmul %6, %7, %cst {dimension_numbers = #tpu.dot_dimension_numbers<[1], [0], [0], [1], [0, 0, 1, 1], [], []>} : vector<8x128xbf16>, vector<128x128xbf16>, vector<8x128xf32> -> vector<8x128xf32>
    %c0_8 = arith.constant 0 : index
    %c0_9 = arith.constant 0 : index
    %9 = vector.load %arg9[%c0_8, %c0_9] : memref<1x128xf32, #tpu.memory_space<vmem>>, vector<1x128xf32>
    %10 = vector.broadcast %9 : vector<1x128xf32> to vector<8x128xf32>
    %11 = arith.addf %8, %10 : vector<8x128xf32>
    %c0_10 = arith.constant 0 : index
    %c0_11 = arith.constant 0 : index
    %12 = vector.load %arg10[%c0_10, %c0_11] : memref<8x128xf32, #tpu.memory_space<vmem>>, vector<8x128xf32>
    tpu.vector_store %arg10[%c0_10, %c0_11], %11 {strides = array<i32>} : memref<8x128xf32, #tpu.memory_space<vmem>>, vector<8x128xf32>,
    return
  }
  func.func @transform_0(%arg0: i32, %arg1: memref<8xi32, #tpu.memory_space<smem>>) -> (i32, i32) {
    %c0_i32 = arith.constant 0 : i32
    %c0_i32_0 = arith.constant 0 : i32
    %c0_i32_1 = arith.constant 0 : i32
    return %c0_i32, %c0_i32_0 : i32, i32
  }
  func.func @transform_2(%arg0: i32, %arg1: memref<8xi32, #tpu.memory_space<smem>>) -> (i32, i32) {
    %c0_i32 = arith.constant 0 : i32
    %c0_i32_0 = arith.constant 0 : i32
    %c0_i32_1 = arith.constant 0 : i32
    return %c0_i32, %c0_i32_0 : i32, i32
  }
  func.func @transform_3(%arg0: i32, %arg1: memref<8xi32, #tpu.memory_space<smem>>) -> (i32, i32) {
    %c0_i32 = arith.constant 0 : i32
    %c0_i32_0 = arith.constant 0 : i32
    %c0_i32_1 = arith.constant 0 : i32
    return %c0_i32, %c0_i32_0 : i32, i32
  }
  func.func @transform_4(%arg0: i32, %arg1: memref<8xi32, #tpu.memory_space<smem>>) -> (i32, i32) {
    %c0_i32 = arith.constant 0 : i32
    %c0_i32_0 = arith.constant 0 : i32
    %c0_i32_1 = arith.constant 0 : i32
    return %c0_i32, %c0_i32_0 : i32, i32
  }
  func.func @transform_5(%arg0: i32, %arg1: memref<8xi32, #tpu.memory_space<smem>>) -> (i32, i32) {
    %c0_i32 = arith.constant 0 : i32
    %c0_i32_0 = arith.constant 0 : i32
    %c0_i32_1 = arith.constant 0 : i32
    return %c0_i32, %c0_i32_0 : i32, i32
  }
  func.func @transform_6(%arg0: i32, %arg1: memref<8xi32, #tpu.memory_space<smem>>) -> (i32, i32) {
    %c0_i32 = arith.constant 0 : i32
    %c0_i32_0 = arith.constant 0 : i32
    return %c0_i32, %arg0 : i32, i32
  }
  func.func @transform_7(%arg0: i32, %arg1: memref<8xi32, #tpu.memory_space<smem>>) -> (i32, i32) {
    %c0_i32 = arith.constant 0 : i32
    %c0_i32_0 = arith.constant 0 : i32
    return %c0_i32, %arg0 : i32, i32
  }
  func.func @transform_8(%arg0: i32, %arg1: memref<8xi32, #tpu.memory_space<smem>>) -> (i32, i32) {
    %c0_i32 = arith.constant 0 : i32
    %c0_i32_0 = arith.constant 0 : i32
    return %c0_i32, %arg0 : i32, i32
  }
  func.func @transform_9(%arg0: i32, %arg1: memref<8xi32, #tpu.memory_space<smem>>) -> (i32, i32) {
    %c0_i32 = arith.constant 0 : i32
    %c0_i32_0 = arith.constant 0 : i32
    %c0_i32_1 = arith.constant 0 : i32
    return %c0_i32, %c0_i32_0 : i32, i32
  }
}

</mosaic_0001>

<llo_original>
// kernel: forward.1
$region0: #{forward.1}
  #allocation0 [shape = 'u32[]', space=smem, size = 0x4, offset = 0x4, fixed_abs, tag = 'smem constant byte address 0x4 - core index']
  #allocation1 [shape = 'u32[144,128]{1,0:T(1,128)}', space=vmem, size = 0x12000, scoped, tag = 'internal scratch']
  #allocation2 [shape = 'f32[8,128]{1,0:T(8,128)}', space=vmem, size = 0x1000, scoped, tag = 'scratch operand']
  #allocation3 [shape = 'f32[8,128]{1,0:T(8,128)}', space=vmem, size = 0x1000, scoped, tag = 'scratch operand']
  #allocation4 [shape = 's32[8]{0}', space=sflag, size = 0x20, scoped, tag = 'scratch operand']
  #allocation5 [shape = 's32[1]{0}', space=sflag, size = 0x4, scoped, tag = 'scoped memory for forward.1']
  #allocation6 [shape = 'u8[512]{0}', space=smem, size = 0x200, scoped, tag = 'prefetched SMEM operand 0']
  #allocation8 [shape = 's32[]', space=sflag, size = 0x4, offset = 0, fixed_abs, tag = 'sflag constant byte address 0x0 - dummy sync flag']
  #allocation9 [shape = 's32[]', space=sflag, size = 0x4, offset = 0, fixed_abs, tag = 'sflag constant byte address 0x0 - dummy sync flag']
  #allocation10 [shape = 's32[]', space=sflag, size = 0x4, offset = 0, fixed_abs, tag = 'sflag constant byte address 0x0 - dummy sync flag']
  #allocation11 [shape = 's32[]', space=sflag, size = 0x4, offset = 0, fixed_abs, tag = 'sflag constant byte address 0x0 - dummy sync flag']
  #allocation12 [shape = 's32[]', space=sflag, size = 0x4, offset = 0, fixed_abs, tag = 'sflag constant byte address 0x0 - dummy sync flag']
  #allocation13 [shape = 's32[]', space=sflag, size = 0x4, offset = 0, fixed_abs, tag = 'sflag constant byte address 0x0 - dummy sync flag']
  #allocation14 [shape = 's32[]', space=sflag, size = 0x4, offset = 0, fixed_abs, tag = 'sflag constant byte address 0x0 - dummy sync flag']
  #allocation15 [shape = 's32[]', space=sflag, size = 0x4, offset = 0, fixed_abs, tag = 'sflag constant byte address 0x0 - dummy sync flag']
  %s0 = inlined_call_operand.vmem [shape: s32[8], index: 0, kind: input, shape index: {}]
  %s1 = inlined_call_operand.vmem [shape: f32[8,128], index: 1, kind: input, shape index: {}]
  %s2 = inlined_call_operand.vmem [shape: f32[160,128], index: 2, kind: input, shape index: {}]
  %s3 = inlined_call_operand.vmem [shape: bf16[128,384], index: 3, kind: input, shape index: {}]
  %s4 = inlined_call_operand.vmem [shape: f32[1,384], index: 4, kind: input, shape index: {}]
  %s5 = inlined_call_operand.vmem [shape: bf16[128,384], index: 5, kind: input, shape index: {}]
  %s6 = inlined_call_operand.vmem [shape: f32[1,384], index: 6, kind: input, shape index: {}]
  %s7 = inlined_call_operand.vmem [shape: bf16[128,256], index: 7, kind: input, shape index: {}]
  %s8 = inlined_call_operand.vmem [shape: f32[1,256], index: 8, kind: input, shape index: {}]
  %s9 = inlined_call_operand.vmem [shape: f32[8,256], index: 9, kind: output, shape index: {0}]
  %s10 = inlined_call_operand.vmem [shape: f32[8,128], index: 10, kind: output, shape index: {1}]
  %11 = xla_tuple %s9, %s10
  %s12 = sld [smem:[#allocation0]]
  $region354: #{forward.1} parent=0
    _
  %s14 = ssub.s32 1, %s12
  %s15 = scalar_select 0, %s14, %s12
  %s16 = sshll.u32 %s0, 4
  %s17 = int_to_ptr.vmem [resolvable:$true] %s16
  %19 = dma.vmem_to_smem %s17, 16, [#allocation6], [#allocation5]
  %20 = dma.done [#allocation5], 16
  %21 = sfence
  $region1: #{forward.1} parent=0
    #allocation7 [shape = 'u8[65536]{0}', space=vmem, size = 0x10000, scoped, tag = 'input window, operand 7']
    loop: start=0, step=1, limit=4
    $region2: #{forward.1} parent=1 // loop_pre_header
      _
    $region3: #{forward.1} parent=1 // loop_header
      %s23 = sphi 0, %s27
      %p24 = scmp.ge.s32.totalorder %s23, 4
      %s31 = sphi 0, %s31
      %s33 = sphi 0, %s31
      %s34 = sphi 0, %s33
      %s48 = sphi 0, %s34
      %s52 = sphi 0, %s52
      %s54 = sphi 0, %s52
      %s55 = sphi 0, %s54
      %s69 = sphi 0, %s55
      %s73 = sphi 0, %s73
      %s75 = sphi 0, %s73
      %s76 = sphi 0, %s75
      %s90 = sphi 0, %s76
      %s94 = sphi 0, %s94
      %s96 = sphi 0, %s94
      %s97 = sphi 0, %s96
      %s111 = sphi 0, %s97
      %s115 = sphi 0, %s115
      %s117 = sphi 0, %s115
      %s118 = sphi 0, %s117
      %s132 = sphi 0, %s118
      %s138 = sphi 0, %s140
      %s141 = sphi 0, %s138
      %s142 = sphi 0, %s141
      %s158 = sphi 0, %s142
      %s164 = sphi 0, %s166
      %s167 = sphi 0, %s164
      %s168 = sphi 0, %s167
      %s184 = sphi 0, %s168
      %s190 = sphi 0, %s192
      %s193 = sphi 0, %s190
      %s194 = sphi 0, %s193
      %s210 = sphi 0, %s194
      %s214 = sphi 0, %s214
      %s216 = sphi 0, %s214
      %s217 = sphi 0, %s216
      %s231 = sphi 0, %s217
    $region4: #{forward.1} parent=1 // loop_header_branch
      %26 = sbr.rel (%p24) target = $region8
    $region5: #{forward.1} parent=1 // loop_body
      %s28 = ssub.s32 %s23, 1
      %s29 = ssub.s32 %s23, 2
      %s30 = sadd.s32 %s23, 1
      %s32 = sadd.s32 %s31, 1
      %p35 = scmp.eq.s32.totalorder %s23, 1
      %p36 = scmp.ne.s32.totalorder %s31, %s33
      %p37 = scmp.eq.s32.totalorder %s23, 0
      %p38 = por %p36, %p37
      %p39 = scmp.ne.s32.totalorder %s31, %s33
      %p40 = scmp.eq.s32.totalorder %s28, 1
      %p41 = por %p39, %p40
      %p42 = scmp.ne.s32.totalorder %s33, %s34
      %p43 = scmp.eq.s32.totalorder %s28, 0
      %p44 = por %p42, %p43
      %p45 = scmp.ne.s32.totalorder %s33, %s34
      %p46 = scmp.eq.s32.totalorder %s29, 1
      %p47 = por %p45, %p46
      %p49 = scmp.ne.s32.totalorder %s34, %s48
      %p50 = scmp.eq.s32.totalorder %s29, 0
      %p51 = por %p49, %p50
      %s53 = sadd.s32 %s52, 1
      %p56 = scmp.eq.s32.totalorder %s23, 1
      %p57 = scmp.ne.s32.totalorder %s52, %s54
      %p58 = scmp.eq.s32.totalorder %s23, 0
      %p59 = por %p57, %p58
      %p60 = scmp.ne.s32.totalorder %s52, %s54
      %p61 = scmp.eq.s32.totalorder %s28, 1
      %p62 = por %p60, %p61
      %p63 = scmp.ne.s32.totalorder %s54, %s55
      %p64 = scmp.eq.s32.totalorder %s28, 0
      %p65 = por %p63, %p64
      %p66 = scmp.ne.s32.totalorder %s54, %s55
      %p67 = scmp.eq.s32.totalorder %s29, 1
      %p68 = por %p66, %p67
      %p70 = scmp.ne.s32.totalorder %s55, %s69
      %p71 = scmp.eq.s32.totalorder %s29, 0
      %p72 = por %p70, %p71
      %s74 = sadd.s32 %s73, 1
      %p77 = scmp.eq.s32.totalorder %s23, 1
      %p78 = scmp.ne.s32.totalorder %s73, %s75
      %p79 = scmp.eq.s32.totalorder %s23, 0
      %p80 = por %p78, %p79
      %p81 = scmp.ne.s32.totalorder %s73, %s75
      %p82 = scmp.eq.s32.totalorder %s28, 1
      %p83 = por %p81, %p82
      %p84 = scmp.ne.s32.totalorder %s75, %s76
      %p85 = scmp.eq.s32.totalorder %s28, 0
      %p86 = por %p84, %p85
      %p87 = scmp.ne.s32.totalorder %s75, %s76
      %p88 = scmp.eq.s32.totalorder %s29, 1
      %p89 = por %p87, %p88
      %p91 = scmp.ne.s32.totalorder %s76, %s90
      %p92 = scmp.eq.s32.totalorder %s29, 0
      %p93 = por %p91, %p92
      %s95 = sadd.s32 %s94, 1
      %p98 = scmp.eq.s32.totalorder %s23, 1
      %p99 = scmp.ne.s32.totalorder %s94, %s96
      %p100 = scmp.eq.s32.totalorder %s23, 0
      %p101 = por %p99, %p100
      %p102 = scmp.ne.s32.totalorder %s94, %s96
      %p103 = scmp.eq.s32.totalorder %s28, 1
      %p104 = por %p102, %p103
      %p105 = scmp.ne.s32.totalorder %s96, %s97
      %p106 = scmp.eq.s32.totalorder %s28, 0
      %p107 = por %p105, %p106
      %p108 = scmp.ne.s32.totalorder %s96, %s97
      %p109 = scmp.eq.s32.totalorder %s29, 1
      %p110 = por %p108, %p109
      %p112 = scmp.ne.s32.totalorder %s97, %s111
      %p113 = scmp.eq.s32.totalorder %s29, 0
      %p114 = por %p112, %p113
      %s116 = sadd.s32 %s115, 1
      %p119 = scmp.eq.s32.totalorder %s23, 1
      %p120 = scmp.ne.s32.totalorder %s115, %s117
      %p121 = scmp.eq.s32.totalorder %s23, 0
      %p122 = por %p120, %p121
      %p123 = scmp.ne.s32.totalorder %s115, %s117
      %p124 = scmp.eq.s32.totalorder %s28, 1
      %p125 = por %p123, %p124
      %p126 = scmp.ne.s32.totalorder %s117, %s118
      %p127 = scmp.eq.s32.totalorder %s28, 0
      %p128 = por %p126, %p127
      %p129 = scmp.ne.s32.totalorder %s117, %s118
      %p130 = scmp.eq.s32.totalorder %s29, 1
      %p131 = por %p129, %p130
      %p133 = scmp.ne.s32.totalorder %s118, %s132
      %p134 = scmp.eq.s32.totalorder %s29, 0
      %p135 = por %p133, %p134
      %s136 = ssub.s32 %s23, %s30
      %p137 = scmp.eq.s32.totalorder %s136, 0
      %s139 = sadd.s32 %s138, 1
      %s140 = scalar_select %p137, %s138, %s139
      %p143 = pneg %p137
      %p144 = scmp.eq.s32.totalorder %s23, 1
      %p145 = por %p143, %p144
      %p146 = scmp.ne.s32.totalorder %s138, %s141
      %p147 = scmp.eq.s32.totalorder %s23, 0
      %p148 = por %p146, %p147
      %p149 = scmp.ne.s32.totalorder %s138, %s141
      %p150 = scmp.eq.s32.totalorder %s28, 1
      %p151 = por %p149, %p150
      %p152 = scmp.ne.s32.totalorder %s141, %s142
      %p153 = scmp.eq.s32.totalorder %s28, 0
      %p154 = por %p152, %p153
      %p155 = scmp.ne.s32.totalorder %s141, %s142
      %p156 = scmp.eq.s32.totalorder %s29, 1
      %p157 = por %p155, %p156
      %p159 = scmp.ne.s32.totalorder %s142, %s158
      %p160 = scmp.eq.s32.totalorder %s29, 0
      %p161 = por %p159, %p160
      %s162 = ssub.s32 %s23, %s30
      %p163 = scmp.eq.s32.totalorder %s162, 0
      %s165 = sadd.s32 %s164, 1
      %s166 = scalar_select %p163, %s164, %s165
      %p169 = pneg %p163
      %p170 = scmp.eq.s32.totalorder %s23, 1
      %p171 = por %p169, %p170
      %p172 = scmp.ne.s32.totalorder %s164, %s167
      %p173 = scmp.eq.s32.totalorder %s23, 0
      %p174 = por %p172, %p173
      %p175 = scmp.ne.s32.totalorder %s164, %s167
      %p176 = scmp.eq.s32.totalorder %s28, 1
      %p177 = por %p175, %p176
      %p178 = scmp.ne.s32.totalorder %s167, %s168
      %p179 = scmp.eq.s32.totalorder %s28, 0
      %p180 = por %p178, %p179
      %p181 = scmp.ne.s32.totalorder %s167, %s168
      %p182 = scmp.eq.s32.totalorder %s29, 1
      %p183 = por %p181, %p182
      %p185 = scmp.ne.s32.totalorder %s168, %s184
      %p186 = scmp.eq.s32.totalorder %s29, 0
      %p187 = por %p185, %p186
      %s188 = ssub.s32 %s23, %s30
      %p189 = scmp.eq.s32.totalorder %s188, 0
      %s191 = sadd.s32 %s190, 1
      %s192 = scalar_select %p189, %s190, %s191
      %p195 = pneg %p189
      %p196 = scmp.eq.s32.totalorder %s23, 1
      %p197 = por %p195, %p196
      %p198 = scmp.ne.s32.totalorder %s190, %s193
      %p199 = scmp.eq.s32.totalorder %s23, 0
      %p200 = por %p198, %p199
      %p201 = scmp.ne.s32.totalorder %s190, %s193
      %p202 = scmp.eq.s32.totalorder %s28, 1
      %p203 = por %p201, %p202
      %p204 = scmp.ne.s32.totalorder %s193, %s194
      %p205 = scmp.eq.s32.totalorder %s28, 0
      %p206 = por %p204, %p205
      %p207 = scmp.ne.s32.totalorder %s193, %s194
      %p208 = scmp.eq.s32.totalorder %s29, 1
      %p209 = por %p207, %p208
      %p211 = scmp.ne.s32.totalorder %s194, %s210
      %p212 = scmp.eq.s32.totalorder %s29, 0
      %p213 = por %p211, %p212
      %s215 = sadd.s32 %s214, 1
      %p218 = scmp.eq.s32.totalorder %s23, 1
      %p219 = scmp.ne.s32.totalorder %s214, %s216
      %p220 = scmp.eq.s32.totalorder %s23, 0
      %p221 = por %p219, %p220
      %p222 = scmp.ne.s32.totalorder %s214, %s216
      %p223 = scmp.eq.s32.totalorder %s28, 1
      %p224 = por %p222, %p223
      %p225 = scmp.ne.s32.totalorder %s216, %s217
      %p226 = scmp.eq.s32.totalorder %s28, 0
      %p227 = por %p225, %p226
      %p228 = scmp.ne.s32.totalorder %s216, %s217
      %p229 = scmp.eq.s32.totalorder %s29, 1
      %p230 = por %p228, %p229
      %p232 = scmp.ne.s32.totalorder %s217, %s231
      %p233 = scmp.eq.s32.totalorder %s29, 0
      %p234 = por %p232, %p233
      %p235 = scmp.le.s32.totalorder 1, %s23
      %p236 = scmp.lt.s32.totalorder %s23, 3
      %p237 = pnand %p235, %p236
      %p238 = pneg %p237
      // Predicated region
      $region9: #{forward.1} parent=5 // pred_check
        _
      $region10: #{forward.1} parent=5 // pred_check_branch
        %240 = sbr.rel (%p237) target = $region12
      $region11: #{forward.1} parent=5 // pred_region
        %s241 = ssub.s32 %s23, 1
        // Predicated region
        $region13: #{forward.1} parent=11 // pred_check
          %p242 = pneg %p44
        $region14: #{forward.1} parent=11 // pred_check_branch
          %244 = sbr.rel (%p242) target = $region16
        $region15: #{forward.1} parent=11 // pred_region
          _
        $region16: #{forward.1} parent=11 // pred_fallthru
          _
        // Predicated region
        $region17: #{forward.1} parent=11 // pred_check
          %p245 = pneg %p65
        $region18: #{forward.1} parent=11 // pred_check_branch
          %247 = sbr.rel (%p245) target = $region20
        $region19: #{forward.1} parent=11 // pred_region
          _
        $region20: #{forward.1} parent=11 // pred_fallthru
          _
        // Predicated region
        $region21: #{forward.1} parent=11 // pred_check
          %p248 = pneg %p86
        $region22: #{forward.1} parent=11 // pred_check_branch
          %250 = sbr.rel (%p248) target = $region24
        $region23: #{forward.1} parent=11 // pred_region
          _
        $region24: #{forward.1} parent=11 // pred_fallthru
          _
        // Predicated region
        $region25: #{forward.1} parent=11 // pred_check
          %p251 = pneg %p107
        $region26: #{forward.1} parent=11 // pred_check_branch
          %253 = sbr.rel (%p251) target = $region28
        $region27: #{forward.1} parent=11 // pred_region
          _
        $region28: #{forward.1} parent=11 // pred_fallthru
          _
        // Predicated region
        $region29: #{forward.1} parent=11 // pred_check
          %p254 = pneg %p128
        $region30: #{forward.1} parent=11 // pred_check_branch
          %256 = sbr.rel (%p254) target = $region32
        $region31: #{forward.1} parent=11 // pred_region
          _
        $region32: #{forward.1} parent=11 // pred_fallthru
          _
      $region12: #{forward.1} parent=5 // pred_fallthru
        _
      %p257 = scmp.lt.s32.totalorder %s23, 2
      // Predicated region
      $region33: #{forward.1} parent=5 // pred_check
        %p258 = pneg %p257
      $region34: #{forward.1} parent=5 // pred_check_branch
        %260 = sbr.rel (%p258) target = $region36
      $region35: #{forward.1} parent=5 // pred_region
        // Predicated region
        $region37: #{forward.1} parent=35 // pred_check
          %p261 = pneg %p148
        $region38: #{forward.1} parent=35 // pred_check_branch
          %263 = sbr.rel (%p261) target = $region40
        $region39: #{forward.1} parent=35 // pred_region
          %s264 = sand.u32 %s138, 1
          %s265 = sand.u32 %s138, 1
          %s266 = smul.addr %s265, 64
          %s267 = scalar_lea.vmem [#allocation7], %s266
          %s268 = smul.addr %s23, 4
          %s269 = scalar_lea.vmem %s7, %s268
          // Predicated region
          $region41: #{forward.1} parent=39 // pred_check
            _
          $region42: #{forward.1} parent=39 // pred_check_branch
            %271 = sbr.rel (0) target = $region44
          $region43: #{forward.1} parent=39 // pred_region
            // Predicated region
            $region45: #{forward.1} parent=43 // pred_check
              _
            $region46: #{forward.1} parent=43 // pred_check_branch
              %273 = sbr.rel target = $region48
            $region47: #{forward.1} parent=43 // pred_region
              // Predicated region
              $region60: #{forward.1} parent=47 // pred_check
                _
              $region61: #{forward.1} parent=47 // pred_check_branch
                %318 = sbr.rel (0) target = $region63
              $region62: #{forward.1} parent=47 // pred_region
                loop: start=0, step=1, limit=1
                $region64: #{forward.1} parent=62 // loop_pre_header
                  _
                $region65: #{forward.1} parent=62 // loop_header
                  %s320 = sphi 0, %s324
                  %p321 = scmp.ge.s32.totalorder %s320, 1
                  %s325 = sphi %s269, %s269
                  %s326 = sphi %s267, %s267
                $region66: #{forward.1} parent=62 // loop_header_branch
                  %323 = sbr.rel (%p321) target = $region70
                $region67: #{forward.1} parent=62 // loop_body
                  _
                $region68: #{forward.1} parent=62 // loop_footer
                  %s324 = sadd.s32 1, %s320
                $region69: #{forward.1} parent=62 // loop_footer_branch
                  %319 = sbr.rel target = $region65
                $region70: #{forward.1} parent=62 // loop_exit
                  _
                loop: start=0, step=1, limit=1
                $region71: #{forward.1} parent=62 // loop_pre_header
                  _
                $region72: #{forward.1} parent=62 // loop_header
                  %s329 = sphi 0, %s333
                  %p330 = scmp.ge.s32.totalorder %s329, 1
                  %s334 = sphi %s269, %s269
                  %s335 = sphi %s267, %s267
                $region73: #{forward.1} parent=62 // loop_header_branch
                  %332 = sbr.rel (%p330) target = $region77
                $region74: #{forward.1} parent=62 // loop_body
                  %v336 = vld [vmem:[%s334] sm:$0xf]
                  %337 = vst [vmem:[%s335] sm:$0xf] %v336
                  %v338 = vld [vmem:[%s334 + $0x8] sm:$0xf]
                  %339 = vst [vmem:[%s335 + $0x4] sm:$0xf] %v338
                  %v340 = vld [vmem:[%s334 + $0x10] sm:$0xf]
                  %341 = vst [vmem:[%s335 + $0x8] sm:$0xf] %v340
                  %v342 = vld [vmem:[%s334 + $0x18] sm:$0xf]
                  %343 = vst [vmem:[%s335 + $0xc] sm:$0xf] %v342
                  %v344 = vld [vmem:[%s334 + $0x20] sm:$0xf]
                  %345 = vst [vmem:[%s335 + $0x10] sm:$0xf] %v344
                  %v346 = vld [vmem:[%s334 + $0x28] sm:$0xf]
                  %347 = vst [vmem:[%s335 + $0x14] sm:$0xf] %v346
                  %v348 = vld [vmem:[%s334 + $0x30] sm:$0xf]
                  %349 = vst [vmem:[%s335 + $0x18] sm:$0xf] %v348
                  %v350 = vld [vmem:[%s334 + $0x38] sm:$0xf]
                  %351 = vst [vmem:[%s335 + $0x1c] sm:$0xf] %v350
                  %v352 = vld [vmem:[%s334 + $0x40] sm:$0xf]
                  %353 = vst [vmem:[%s335 + $0x20] sm:$0xf] %v352
                  %v354 = vld [vmem:[%s334 + $0x48] sm:$0xf]
                  %355 = vst [vmem:[%s335 + $0x24] sm:$0xf] %v354
                  %v356 = vld [vmem:[%s334 + $0x50] sm:$0xf]
                  %357 = vst [vmem:[%s335 + $0x28] sm:$0xf] %v356
                  %v358 = vld [vmem:[%s334 + $0x58] sm:$0xf]
                  %359 = vst [vmem:[%s335 + $0x2c] sm:$0xf] %v358
                  %v360 = vld [vmem:[%s334 + $0x60] sm:$0xf]
                  %361 = vst [vmem:[%s335 + $0x30] sm:$0xf] %v360
                  %v362 = vld [vmem:[%s334 + $0x68] sm:$0xf]
                  %363 = vst [vmem:[%s335 + $0x34] sm:$0xf] %v362
                  %v364 = vld [vmem:[%s334 + $0x70] sm:$0xf]
                  %365 = vst [vmem:[%s335 + $0x38] sm:$0xf] %v364
                  %v366 = vld [vmem:[%s334 + $0x78] sm:$0xf]
                  %367 = vst [vmem:[%s335 + $0x3c] sm:$0xf] %v366
                $region75: #{forward.1} parent=62 // loop_footer
                  %s333 = sadd.s32 1, %s329
                $region76: #{forward.1} parent=62 // loop_footer_branch
                  %328 = sbr.rel target = $region72
                $region77: #{forward.1} parent=62 // loop_exit
                  _
              $region63: #{forward.1} parent=47 // pred_fallthru
                _
            $region48: #{forward.1} parent=43 // pred_fallthru
              _
            // Predicated region
            $region49: #{forward.1} parent=43 // pred_check
              _
            $region50: #{forward.1} parent=43 // pred_check_branch
              %275 = sbr.rel (0) target = $region52
            $region51: #{forward.1} parent=43 // pred_region
              loop: start=0, step=1, limit=1
              $region53: #{forward.1} parent=51 // loop_pre_header
                _
              $region54: #{forward.1} parent=51 // loop_header
                %s278 = sphi 0, %s282
                %p279 = scmp.ge.s32.totalorder %s278, 1
                %s283 = sphi %s269, %s269
                %s284 = sphi %s267, %s267
              $region55: #{forward.1} parent=51 // loop_header_branch
                %281 = sbr.rel (%p279) target = $region59
              $region56: #{forward.1} parent=51 // loop_body
                %v285 = vld [vmem:[%s283] sm:$0xf]
                %286 = vst [vmem:[%s284] sm:$0xf] %v285
                %v287 = vld [vmem:[%s283 + $0x8] sm:$0xf]
                %288 = vst [vmem:[%s284 + $0x4] sm:$0xf] %v287
                %v289 = vld [vmem:[%s283 + $0x10] sm:$0xf]
                %290 = vst [vmem:[%s284 + $0x8] sm:$0xf] %v289
                %v291 = vld [vmem:[%s283 + $0x18] sm:$0xf]
                %292 = vst [vmem:[%s284 + $0xc] sm:$0xf] %v291
                %v293 = vld [vmem:[%s283 + $0x20] sm:$0xf]
                %294 = vst [vmem:[%s284 + $0x10] sm:$0xf] %v293
                %v295 = vld [vmem:[%s283 + $0x28] sm:$0xf]
                %296 = vst [vmem:[%s284 + $0x14] sm:$0xf] %v295
                %v297 = vld [vmem:[%s283 + $0x30] sm:$0xf]
                %298 = vst [vmem:[%s284 + $0x18] sm:$0xf] %v297
                %v299 = vld [vmem:[%s283 + $0x38] sm:$0xf]
                %300 = vst [vmem:[%s284 + $0x1c] sm:$0xf] %v299
                %v301 = vld [vmem:[%s283 + $0x40] sm:$0xf]
                %302 = vst [vmem:[%s284 + $0x20] sm:$0xf] %v301
                %v303 = vld [vmem:[%s283 + $0x48] sm:$0xf]
                %304 = vst [vmem:[%s284 + $0x24] sm:$0xf] %v303
                %v305 = vld [vmem:[%s283 + $0x50] sm:$0xf]
                %306 = vst [vmem:[%s284 + $0x28] sm:$0xf] %v305
                %v307 = vld [vmem:[%s283 + $0x58] sm:$0xf]
                %308 = vst [vmem:[%s284 + $0x2c] sm:$0xf] %v307
                %v309 = vld [vmem:[%s283 + $0x60] sm:$0xf]
                %310 = vst [vmem:[%s284 + $0x30] sm:$0xf] %v309
                %v311 = vld [vmem:[%s283 + $0x68] sm:$0xf]
                %312 = vst [vmem:[%s284 + $0x34] sm:$0xf] %v311
                %v313 = vld [vmem:[%s283 + $0x70] sm:$0xf]
                %314 = vst [vmem:[%s284 + $0x38] sm:$0xf] %v313
                %v315 = vld [vmem:[%s283 + $0x78] sm:$0xf]
                %316 = vst [vmem:[%s284 + $0x3c] sm:$0xf] %v315
              $region57: #{forward.1} parent=51 // loop_footer
                %s282 = sadd.s32 1, %s278
              $region58: #{forward.1} parent=51 // loop_footer_branch
                %277 = sbr.rel target = $region54
              $region59: #{forward.1} parent=51 // loop_exit
                _
            $region52: #{forward.1} parent=43 // pred_fallthru
              _
          $region44: #{forward.1} parent=39 // pred_fallthru
            _
          %368 = vnop
        $region40: #{forward.1} parent=35 // pred_fallthru
          _
        // Predicated region
        $region78: #{forward.1} parent=35 // pred_check
          %p369 = pneg %p174
        $region79: #{forward.1} parent=35 // pred_check_branch
          %371 = sbr.rel (%p369) target = $region81
        $region80: #{forward.1} parent=35 // pred_region
          %p372 = scmp.lt.s32.totalorder %s23, 1
          %s373 = scalar_select %p372, %s23, 1
          %s374 = scalar_lea.vmem %s8, %s373
        $region81: #{forward.1} parent=35 // pred_fallthru
          _
      $region36: #{forward.1} parent=5 // pred_fallthru
        _
      %p375 = scmp.le.s32.totalorder 1, %s23
      %p376 = scmp.lt.s32.totalorder %s23, 3
      %p377 = pnand %p375, %p376
      %p378 = pneg %p377
      // Predicated region
      $region82: #{forward.1} parent=5 // pred_check
        _
      $region83: #{forward.1} parent=5 // pred_check_branch
        %380 = sbr.rel (%p377) target = $region85
      $region84: #{forward.1} parent=5 // pred_region
        %s381 = ssub.s32 %s23, 1
        %s382 = sand.u32 %s141, 1
        %s383 = sand.u32 %s141, 1
        %s384 = smul.addr %s383, 64
        %s385 = scalar_lea.vmem [#allocation7], %s384
        // Predicated region
        $region86: #{forward.1} parent=84 // pred_check
          %p386 = pneg %p154
        $region87: #{forward.1} parent=84 // pred_check_branch
          %388 = sbr.rel (%p386) target = $region89
        $region88: #{forward.1} parent=84 // pred_region
          _
        $region89: #{forward.1} parent=84 // pred_fallthru
          _
        %p389 = pneg %p44
        %p390 = pneg %p41
        %p391 = pneg %p65
        %p392 = pneg %p62
        %p393 = pneg %p86
        %p394 = pneg %p83
        %p395 = pneg %p107
        %p396 = pneg %p104
        %p397 = pneg %p128
        %p398 = pneg %p125
        %s399 = sand.u32 %s141, 1
        %s400 = sand.u32 %s141, 1
        %s401 = smul.addr %s400, 64
        %s402 = scalar_lea.vmem [#allocation7], %s401
        %p403 = pneg %p154
        %p404 = pneg %p151
        %p405 = scmp.lt.s32.totalorder %s28, 1
        %s406 = scalar_select %p405, %s28, 1
        %s407 = scalar_lea.vmem %s8, %s406
        %p408 = pneg %p180
        %p409 = pneg %p177
        %p410 = pneg %p206
        %p411 = pneg %p203
        %p412 = scmp.lt.s32.totalorder %s28, 1
        %s413 = scalar_select %p412, %s28, 1
        %s414 = smul.addr %s413, 8
        %s415 = scalar_lea.vmem %s9, %s414
        %p416 = pneg %p227
        %p417 = pneg %p224
        %p418 = scmp.lt.s32.totalorder %s28, 1
        %s419 = scalar_select %p418, %s28, 1
        %s420 = scalar_lea.vmem %s8, %s419
        %p421 = scmp.lt.s32.totalorder %s28, 1
        %s422 = scalar_select %p421, %s28, 1
        %s423 = smul.addr %s422, 8
        %s424 = scalar_lea.vmem %s9, %s423
        %p426 = scmp.eq.s32.totalorder %s28, 0
        // Predicated region
        $region90: #{forward.1} parent=84 // pred_check
          %p427 = pneg %p426
        $region91: #{forward.1} parent=84 // pred_check_branch
          %429 = sbr.rel (%p427) target = $region93
        $region92: #{forward.1} parent=84 // pred_region
          %s430 = sld [smem:[#allocation6]]
          %s431 = sld [smem:[#allocation6 + $0x1]]
          %s432 = sld [smem:[#allocation6 + $0x2]]
          %s433 = sld [smem:[#allocation6 + $0x3]]
          %s434 = sld [smem:[#allocation6 + $0x4]]
          %s435 = sld [smem:[#allocation6 + $0x5]]
          %s436 = sld [smem:[#allocation6 + $0x6]]
          %s437 = sld [smem:[#allocation6 + $0x7]]
          %s438 = scalar_lea.vmem %s2, %s430
          %p440 = scmp.lt.u32.totalorder 1, 8
          %p441 = pneg %p440
          // Predicated region
          $region94: #{forward.1} parent=92 // pred_check
            _
          $region95: #{forward.1} parent=92 // pred_check_branch
            %443 = sbr.rel (%p440) target = $region97
          $region96: #{forward.1} parent=92 // pred_region
            %s458 = sand.u32 1, 7
            %p459 = scmp.eq.s32.totalorder %s458, 0
            %p460 = pneg %p459
            // Predicated region
            $region109: #{forward.1} parent=96 // pred_check
              _
            $region110: #{forward.1} parent=96 // pred_check_branch
              %462 = sbr.rel (%p459) target = $region112
            $region111: #{forward.1} parent=96 // pred_region
              %s463 = sand.u32 1, 7
              %s464 = ssub.s32 1, %s463
              %s465 = scalar_lea.vmem %s438, %s464
              %s466 = ssub.s32 1, %s463
              %s467 = scalar_lea.vmem [#allocation2], %s466
              %s468 = sshllo.u32 0, %s463
              loop: start=0, step=1, limit=1
              $region113: #{forward.1} parent=111 // loop_pre_header
                _
              $region114: #{forward.1} parent=111 // loop_header
                %s470 = sphi 0, %s474
                %p471 = scmp.ge.s32.totalorder %s470, 1
                %s475 = sphi %s465, %s465
                %s476 = sphi %s467, %s467
              $region115: #{forward.1} parent=111 // loop_header_branch
                %473 = sbr.rel (%p471) target = $region119
              $region116: #{forward.1} parent=111 // loop_body
                %v477 = vld [vmem:[%s475] sm:%s468]
                %478 = vst [vmem:[%s476] sm:%s468] %v477
              $region117: #{forward.1} parent=111 // loop_footer
                %s474 = sadd.s32 1, %s470
              $region118: #{forward.1} parent=111 // loop_footer_branch
                %469 = sbr.rel target = $region114
              $region119: #{forward.1} parent=111 // loop_exit
                _
            $region112: #{forward.1} parent=96 // pred_fallthru
              _
          $region97: #{forward.1} parent=92 // pred_fallthru
            _
          // Predicated region
          $region98: #{forward.1} parent=92 // pred_check
            %p444 = pneg %p440
          $region99: #{forward.1} parent=92 // pred_check_branch
            %446 = sbr.rel (%p444) target = $region101
          $region100: #{forward.1} parent=92 // pred_region
            %s447 = sshllo.u32 0, 1
            loop: start=0, step=1, limit=1
            $region102: #{forward.1} parent=100 // loop_pre_header
              _
            $region103: #{forward.1} parent=100 // loop_header
              %s449 = sphi 0, %s453
              %p450 = scmp.ge.s32.totalorder %s449, 1
              %s454 = sphi %s438, %s438
              %s455 = sphi [#allocation2], [#allocation2]
            $region104: #{forward.1} parent=100 // loop_header_branch
              %452 = sbr.rel (%p450) target = $region108
            $region105: #{forward.1} parent=100 // loop_body
              %v456 = vld [vmem:[%s454] sm:%s447]
              %457 = vst [vmem:[%s455] sm:%s447] %v456
            $region106: #{forward.1} parent=100 // loop_footer
              %s453 = sadd.s32 1, %s449
            $region107: #{forward.1} parent=100 // loop_footer_branch
              %448 = sbr.rel target = $region103
            $region108: #{forward.1} parent=100 // loop_exit
              _
          $region101: #{forward.1} parent=92 // pred_fallthru
            _
          // Predicated region
          $region120: #{forward.1} parent=92 // pred_check
            _
          $region121: #{forward.1} parent=92 // pred_check_branch
            %481 = sbr.rel (0) target = $region123
          $region122: #{forward.1} parent=92 // pred_region
            %482 = vsyncadd [#allocation4], 16
          $region123: #{forward.1} parent=92 // pred_fallthru
            _
          %s483 = scalar_lea.vmem %s2, %s431
          %s484 = scalar_lea.vmem [#allocation2], 1
          %s485 = scalar_lea.sflag [#allocation4], 1
          %p487 = scmp.lt.u32.totalorder 1, 8
          %p488 = pneg %p487
          // Predicated region
          $region124: #{forward.1} parent=92 // pred_check
            _
          $region125: #{forward.1} parent=92 // pred_check_branch
            %490 = sbr.rel (%p487) target = $region127
          $region126: #{forward.1} parent=92 // pred_region
            %s505 = sand.u32 1, 7
            %p506 = scmp.eq.s32.totalorder %s505, 0
            %p507 = pneg %p506
            // Predicated region
            $region139: #{forward.1} parent=126 // pred_check
              _
            $region140: #{forward.1} parent=126 // pred_check_branch
              %509 = sbr.rel (%p506) target = $region142
            $region141: #{forward.1} parent=126 // pred_region
              %s510 = sand.u32 1, 7
              %s511 = ssub.s32 1, %s510
              %s512 = scalar_lea.vmem %s483, %s511
              %s513 = ssub.s32 1, %s510
              %s514 = scalar_lea.vmem %s484, %s513 [#allocation2]
              %s515 = sshllo.u32 0, %s510
              loop: start=0, step=1, limit=1
              $region143: #{forward.1} parent=141 // loop_pre_header
                _
              $region144: #{forward.1} parent=141 // loop_header
                %s517 = sphi 0, %s521
                %p518 = scmp.ge.s32.totalorder %s517, 1
                %s522 = sphi %s512, %s512
                %s523 = sphi %s514, %s514
              $region145: #{forward.1} parent=141 // loop_header_branch
                %520 = sbr.rel (%p518) target = $region149
              $region146: #{forward.1} parent=141 // loop_body
                %v524 = vld [vmem:[%s522] sm:%s515]
                %525 = vst [vmem:[%s523] sm:%s515] %v524
              $region147: #{forward.1} parent=141 // loop_footer
                %s521 = sadd.s32 1, %s517
              $region148: #{forward.1} parent=141 // loop_footer_branch
                %516 = sbr.rel target = $region144
              $region149: #{forward.1} parent=141 // loop_exit
                _
            $region142: #{forward.1} parent=126 // pred_fallthru
              _
          $region127: #{forward.1} parent=92 // pred_fallthru
            _
          // Predicated region
          $region128: #{forward.1} parent=92 // pred_check
            %p491 = pneg %p487
          $region129: #{forward.1} parent=92 // pred_check_branch
            %493 = sbr.rel (%p491) target = $region131
          $region130: #{forward.1} parent=92 // pred_region
            %s494 = sshllo.u32 0, 1
            loop: start=0, step=1, limit=1
            $region132: #{forward.1} parent=130 // loop_pre_header
              _
            $region133: #{forward.1} parent=130 // loop_header
              %s496 = sphi 0, %s500
              %p497 = scmp.ge.s32.totalorder %s496, 1
              %s501 = sphi %s483, %s483
              %s502 = sphi %s484, %s484
            $region134: #{forward.1} parent=130 // loop_header_branch
              %499 = sbr.rel (%p497) target = $region138
            $region135: #{forward.1} parent=130 // loop_body
              %v503 = vld [vmem:[%s501] sm:%s494]
              %504 = vst [vmem:[%s502] sm:%s494] %v503
            $region136: #{forward.1} parent=130 // loop_footer
              %s500 = sadd.s32 1, %s496
            $region137: #{forward.1} parent=130 // loop_footer_branch
              %495 = sbr.rel target = $region133
            $region138: #{forward.1} parent=130 // loop_exit
              _
          $region131: #{forward.1} parent=92 // pred_fallthru
            _
          // Predicated region
          $region150: #{forward.1} parent=92 // pred_check
            _
          $region151: #{forward.1} parent=92 // pred_check_branch
            %528 = sbr.rel (0) target = $region153
          $region152: #{forward.1} parent=92 // pred_region
            %529 = vsyncadd %s485, 16
          $region153: #{forward.1} parent=92 // pred_fallthru
            _
          %s530 = scalar_lea.vmem %s2, %s432
          %s531 = scalar_lea.vmem [#allocation2], 2
          %s532 = scalar_lea.sflag [#allocation4], 2
          %p534 = scmp.lt.u32.totalorder 1, 8
          %p535 = pneg %p534
          // Predicated region
          $region154: #{forward.1} parent=92 // pred_check
            _
          $region155: #{forward.1} parent=92 // pred_check_branch
            %537 = sbr.rel (%p534) target = $region157
          $region156: #{forward.1} parent=92 // pred_region
            %s552 = sand.u32 1, 7
            %p553 = scmp.eq.s32.totalorder %s552, 0
            %p554 = pneg %p553
            // Predicated region
            $region169: #{forward.1} parent=156 // pred_check
              _
            $region170: #{forward.1} parent=156 // pred_check_branch
              %556 = sbr.rel (%p553) target = $region172
            $region171: #{forward.1} parent=156 // pred_region
              %s557 = sand.u32 1, 7
              %s558 = ssub.s32 1, %s557
              %s559 = scalar_lea.vmem %s530, %s558
              %s560 = ssub.s32 1, %s557
              %s561 = scalar_lea.vmem %s531, %s560 [#allocation2]
              %s562 = sshllo.u32 0, %s557
              loop: start=0, step=1, limit=1
              $region173: #{forward.1} parent=171 // loop_pre_header
                _
              $region174: #{forward.1} parent=171 // loop_header
                %s564 = sphi 0, %s568
                %p565 = scmp.ge.s32.totalorder %s564, 1
                %s569 = sphi %s559, %s559
                %s570 = sphi %s561, %s561
              $region175: #{forward.1} parent=171 // loop_header_branch
                %567 = sbr.rel (%p565) target = $region179
              $region176: #{forward.1} parent=171 // loop_body
                %v571 = vld [vmem:[%s569] sm:%s562]
                %572 = vst [vmem:[%s570] sm:%s562] %v571
              $region177: #{forward.1} parent=171 // loop_footer
                %s568 = sadd.s32 1, %s564
              $region178: #{forward.1} parent=171 // loop_footer_branch
                %563 = sbr.rel target = $region174
              $region179: #{forward.1} parent=171 // loop_exit
                _
            $region172: #{forward.1} parent=156 // pred_fallthru
              _
          $region157: #{forward.1} parent=92 // pred_fallthru
            _
          // Predicated region
          $region158: #{forward.1} parent=92 // pred_check
            %p538 = pneg %p534
          $region159: #{forward.1} parent=92 // pred_check_branch
            %540 = sbr.rel (%p538) target = $region161
          $region160: #{forward.1} parent=92 // pred_region
            %s541 = sshllo.u32 0, 1
            loop: start=0, step=1, limit=1
            $region162: #{forward.1} parent=160 // loop_pre_header
              _
            $region163: #{forward.1} parent=160 // loop_header
              %s543 = sphi 0, %s547
              %p544 = scmp.ge.s32.totalorder %s543, 1
              %s548 = sphi %s530, %s530
              %s549 = sphi %s531, %s531
            $region164: #{forward.1} parent=160 // loop_header_branch
              %546 = sbr.rel (%p544) target = $region168
            $region165: #{forward.1} parent=160 // loop_body
              %v550 = vld [vmem:[%s548] sm:%s541]
              %551 = vst [vmem:[%s549] sm:%s541] %v550
            $region166: #{forward.1} parent=160 // loop_footer
              %s547 = sadd.s32 1, %s543
            $region167: #{forward.1} parent=160 // loop_footer_branch
              %542 = sbr.rel target = $region163
            $region168: #{forward.1} parent=160 // loop_exit
              _
          $region161: #{forward.1} parent=92 // pred_fallthru
            _
          // Predicated region
          $region180: #{forward.1} parent=92 // pred_check
            _
          $region181: #{forward.1} parent=92 // pred_check_branch
            %575 = sbr.rel (0) target = $region183
          $region182: #{forward.1} parent=92 // pred_region
            %576 = vsyncadd %s532, 16
          $region183: #{forward.1} parent=92 // pred_fallthru
            _
          %s577 = scalar_lea.vmem %s2, %s433
          %s578 = scalar_lea.vmem [#allocation2], 3
          %s579 = scalar_lea.sflag [#allocation4], 3
          %p581 = scmp.lt.u32.totalorder 1, 8
          %p582 = pneg %p581
          // Predicated region
          $region184: #{forward.1} parent=92 // pred_check
            _
          $region185: #{forward.1} parent=92 // pred_check_branch
            %584 = sbr.rel (%p581) target = $region187
          $region186: #{forward.1} parent=92 // pred_region
            %s599 = sand.u32 1, 7
            %p600 = scmp.eq.s32.totalorder %s599, 0
            %p601 = pneg %p600
            // Predicated region
            $region199: #{forward.1} parent=186 // pred_check
              _
            $region200: #{forward.1} parent=186 // pred_check_branch
              %603 = sbr.rel (%p600) target = $region202
            $region201: #{forward.1} parent=186 // pred_region
              %s604 = sand.u32 1, 7
              %s605 = ssub.s32 1, %s604
              %s606 = scalar_lea.vmem %s577, %s605
              %s607 = ssub.s32 1, %s604
              %s608 = scalar_lea.vmem %s578, %s607 [#allocation2]
              %s609 = sshllo.u32 0, %s604
              loop: start=0, step=1, limit=1
              $region203: #{forward.1} parent=201 // loop_pre_header
                _
              $region204: #{forward.1} parent=201 // loop_header
                %s611 = sphi 0, %s615
                %p612 = scmp.ge.s32.totalorder %s611, 1
                %s616 = sphi %s606, %s606
                %s617 = sphi %s608, %s608
              $region205: #{forward.1} parent=201 // loop_header_branch
                %614 = sbr.rel (%p612) target = $region209
              $region206: #{forward.1} parent=201 // loop_body
                %v618 = vld [vmem:[%s616] sm:%s609]
                %619 = vst [vmem:[%s617] sm:%s609] %v618
              $region207: #{forward.1} parent=201 // loop_footer
                %s615 = sadd.s32 1, %s611
              $region208: #{forward.1} parent=201 // loop_footer_branch
                %610 = sbr.rel target = $region204
              $region209: #{forward.1} parent=201 // loop_exit
                _
            $region202: #{forward.1} parent=186 // pred_fallthru
              _
          $region187: #{forward.1} parent=92 // pred_fallthru
            _
          // Predicated region
          $region188: #{forward.1} parent=92 // pred_check
            %p585 = pneg %p581
          $region189: #{forward.1} parent=92 // pred_check_branch
            %587 = sbr.rel (%p585) target = $region191
          $region190: #{forward.1} parent=92 // pred_region
            %s588 = sshllo.u32 0, 1
            loop: start=0, step=1, limit=1
            $region192: #{forward.1} parent=190 // loop_pre_header
              _
            $region193: #{forward.1} parent=190 // loop_header
              %s590 = sphi 0, %s594
              %p591 = scmp.ge.s32.totalorder %s590, 1
              %s595 = sphi %s577, %s577
              %s596 = sphi %s578, %s578
            $region194: #{forward.1} parent=190 // loop_header_branch
              %593 = sbr.rel (%p591) target = $region198
            $region195: #{forward.1} parent=190 // loop_body
              %v597 = vld [vmem:[%s595] sm:%s588]
              %598 = vst [vmem:[%s596] sm:%s588] %v597
            $region196: #{forward.1} parent=190 // loop_footer
              %s594 = sadd.s32 1, %s590
            $region197: #{forward.1} parent=190 // loop_footer_branch
              %589 = sbr.rel target = $region193
            $region198: #{forward.1} parent=190 // loop_exit
              _
          $region191: #{forward.1} parent=92 // pred_fallthru
            _
          // Predicated region
          $region210: #{forward.1} parent=92 // pred_check
            _
          $region211: #{forward.1} parent=92 // pred_check_branch
            %622 = sbr.rel (0) target = $region213
          $region212: #{forward.1} parent=92 // pred_region
            %623 = vsyncadd %s579, 16
          $region213: #{forward.1} parent=92 // pred_fallthru
            _
          %s624 = scalar_lea.vmem %s2, %s434
          %s625 = scalar_lea.vmem [#allocation2], 4
          %s626 = scalar_lea.sflag [#allocation4], 4
          %p628 = scmp.lt.u32.totalorder 1, 8
          %p629 = pneg %p628
          // Predicated region
          $region214: #{forward.1} parent=92 // pred_check
            _
          $region215: #{forward.1} parent=92 // pred_check_branch
            %631 = sbr.rel (%p628) target = $region217
          $region216: #{forward.1} parent=92 // pred_region
            %s646 = sand.u32 1, 7
            %p647 = scmp.eq.s32.totalorder %s646, 0
            %p648 = pneg %p647
            // Predicated region
            $region229: #{forward.1} parent=216 // pred_check
              _
            $region230: #{forward.1} parent=216 // pred_check_branch
              %650 = sbr.rel (%p647) target = $region232
            $region231: #{forward.1} parent=216 // pred_region
              %s651 = sand.u32 1, 7
              %s652 = ssub.s32 1, %s651
              %s653 = scalar_lea.vmem %s624, %s652
              %s654 = ssub.s32 1, %s651
              %s655 = scalar_lea.vmem %s625, %s654 [#allocation2]
              %s656 = sshllo.u32 0, %s651
              loop: start=0, step=1, limit=1
              $region233: #{forward.1} parent=231 // loop_pre_header
                _
              $region234: #{forward.1} parent=231 // loop_header
                %s658 = sphi 0, %s662
                %p659 = scmp.ge.s32.totalorder %s658, 1
                %s663 = sphi %s653, %s653
                %s664 = sphi %s655, %s655
              $region235: #{forward.1} parent=231 // loop_header_branch
                %661 = sbr.rel (%p659) target = $region239
              $region236: #{forward.1} parent=231 // loop_body
                %v665 = vld [vmem:[%s663] sm:%s656]
                %666 = vst [vmem:[%s664] sm:%s656] %v665
              $region237: #{forward.1} parent=231 // loop_footer
                %s662 = sadd.s32 1, %s658
              $region238: #{forward.1} parent=231 // loop_footer_branch
                %657 = sbr.rel target = $region234
              $region239: #{forward.1} parent=231 // loop_exit
                _
            $region232: #{forward.1} parent=216 // pred_fallthru
              _
          $region217: #{forward.1} parent=92 // pred_fallthru
            _
          // Predicated region
          $region218: #{forward.1} parent=92 // pred_check
            %p632 = pneg %p628
          $region219: #{forward.1} parent=92 // pred_check_branch
            %634 = sbr.rel (%p632) target = $region221
          $region220: #{forward.1} parent=92 // pred_region
            %s635 = sshllo.u32 0, 1
            loop: start=0, step=1, limit=1
            $region222: #{forward.1} parent=220 // loop_pre_header
              _
            $region223: #{forward.1} parent=220 // loop_header
              %s637 = sphi 0, %s641
              %p638 = scmp.ge.s32.totalorder %s637, 1
              %s642 = sphi %s624, %s624
              %s643 = sphi %s625, %s625
            $region224: #{forward.1} parent=220 // loop_header_branch
              %640 = sbr.rel (%p638) target = $region228
            $region225: #{forward.1} parent=220 // loop_body
              %v644 = vld [vmem:[%s642] sm:%s635]
              %645 = vst [vmem:[%s643] sm:%s635] %v644
            $region226: #{forward.1} parent=220 // loop_footer
              %s641 = sadd.s32 1, %s637
            $region227: #{forward.1} parent=220 // loop_footer_branch
              %636 = sbr.rel target = $region223
            $region228: #{forward.1} parent=220 // loop_exit
              _
          $region221: #{forward.1} parent=92 // pred_fallthru
            _
          // Predicated region
          $region240: #{forward.1} parent=92 // pred_check
            _
          $region241: #{forward.1} parent=92 // pred_check_branch
            %669 = sbr.rel (0) target = $region243
          $region242: #{forward.1} parent=92 // pred_region
            %670 = vsyncadd %s626, 16
          $region243: #{forward.1} parent=92 // pred_fallthru
            _
          %s671 = scalar_lea.vmem %s2, %s435
          %s672 = scalar_lea.vmem [#allocation2], 5
          %s673 = scalar_lea.sflag [#allocation4], 5
          %p675 = scmp.lt.u32.totalorder 1, 8
          %p676 = pneg %p675
          // Predicated region
          $region244: #{forward.1} parent=92 // pred_check
            _
          $region245: #{forward.1} parent=92 // pred_check_branch
            %678 = sbr.rel (%p675) target = $region247
          $region246: #{forward.1} parent=92 // pred_region
            %s693 = sand.u32 1, 7
            %p694 = scmp.eq.s32.totalorder %s693, 0
            %p695 = pneg %p694
            // Predicated region
            $region259: #{forward.1} parent=246 // pred_check
              _
            $region260: #{forward.1} parent=246 // pred_check_branch
              %697 = sbr.rel (%p694) target = $region262
            $region261: #{forward.1} parent=246 // pred_region
              %s698 = sand.u32 1, 7
              %s699 = ssub.s32 1, %s698
              %s700 = scalar_lea.vmem %s671, %s699
              %s701 = ssub.s32 1, %s698
              %s702 = scalar_lea.vmem %s672, %s701 [#allocation2]
              %s703 = sshllo.u32 0, %s698
              loop: start=0, step=1, limit=1
              $region263: #{forward.1} parent=261 // loop_pre_header
                _
              $region264: #{forward.1} parent=261 // loop_header
                %s705 = sphi 0, %s709
                %p706 = scmp.ge.s32.totalorder %s705, 1
                %s710 = sphi %s700, %s700
                %s711 = sphi %s702, %s702
              $region265: #{forward.1} parent=261 // loop_header_branch
                %708 = sbr.rel (%p706) target = $region269
              $region266: #{forward.1} parent=261 // loop_body
                %v712 = vld [vmem:[%s710] sm:%s703]
                %713 = vst [vmem:[%s711] sm:%s703] %v712
              $region267: #{forward.1} parent=261 // loop_footer
                %s709 = sadd.s32 1, %s705
              $region268: #{forward.1} parent=261 // loop_footer_branch
                %704 = sbr.rel target = $region264
              $region269: #{forward.1} parent=261 // loop_exit
                _
            $region262: #{forward.1} parent=246 // pred_fallthru
              _
          $region247: #{forward.1} parent=92 // pred_fallthru
            _
          // Predicated region
          $region248: #{forward.1} parent=92 // pred_check
            %p679 = pneg %p675
          $region249: #{forward.1} parent=92 // pred_check_branch
            %681 = sbr.rel (%p679) target = $region251
          $region250: #{forward.1} parent=92 // pred_region
            %s682 = sshllo.u32 0, 1
            loop: start=0, step=1, limit=1
            $region252: #{forward.1} parent=250 // loop_pre_header
              _
            $region253: #{forward.1} parent=250 // loop_header
              %s684 = sphi 0, %s688
              %p685 = scmp.ge.s32.totalorder %s684, 1
              %s689 = sphi %s671, %s671
              %s690 = sphi %s672, %s672
            $region254: #{forward.1} parent=250 // loop_header_branch
              %687 = sbr.rel (%p685) target = $region258
            $region255: #{forward.1} parent=250 // loop_body
              %v691 = vld [vmem:[%s689] sm:%s682]
              %692 = vst [vmem:[%s690] sm:%s682] %v691
            $region256: #{forward.1} parent=250 // loop_footer
              %s688 = sadd.s32 1, %s684
            $region257: #{forward.1} parent=250 // loop_footer_branch
              %683 = sbr.rel target = $region253
            $region258: #{forward.1} parent=250 // loop_exit
              _
          $region251: #{forward.1} parent=92 // pred_fallthru
            _
          // Predicated region
          $region270: #{forward.1} parent=92 // pred_check
            _
          $region271: #{forward.1} parent=92 // pred_check_branch
            %716 = sbr.rel (0) target = $region273
          $region272: #{forward.1} parent=92 // pred_region
            %717 = vsyncadd %s673, 16
          $region273: #{forward.1} parent=92 // pred_fallthru
            _
          %s718 = scalar_lea.vmem %s2, %s436
          %s719 = scalar_lea.vmem [#allocation2], 6
          %s720 = scalar_lea.sflag [#allocation4], 6
          %p722 = scmp.lt.u32.totalorder 1, 8
          %p723 = pneg %p722
          // Predicated region
          $region274: #{forward.1} parent=92 // pred_check
            _
          $region275: #{forward.1} parent=92 // pred_check_branch
            %725 = sbr.rel (%p722) target = $region277
          $region276: #{forward.1} parent=92 // pred_region
            %s740 = sand.u32 1, 7
            %p741 = scmp.eq.s32.totalorder %s740, 0
            %p742 = pneg %p741
            // Predicated region
            $region289: #{forward.1} parent=276 // pred_check
              _
            $region290: #{forward.1} parent=276 // pred_check_branch
              %744 = sbr.rel (%p741) target = $region292
            $region291: #{forward.1} parent=276 // pred_region
              %s745 = sand.u32 1, 7
              %s746 = ssub.s32 1, %s745
              %s747 = scalar_lea.vmem %s718, %s746
              %s748 = ssub.s32 1, %s745
              %s749 = scalar_lea.vmem %s719, %s748 [#allocation2]
              %s750 = sshllo.u32 0, %s745
              loop: start=0, step=1, limit=1
              $region293: #{forward.1} parent=291 // loop_pre_header
                _
              $region294: #{forward.1} parent=291 // loop_header
                %s752 = sphi 0, %s756
                %p753 = scmp.ge.s32.totalorder %s752, 1
                %s757 = sphi %s747, %s747
                %s758 = sphi %s749, %s749
              $region295: #{forward.1} parent=291 // loop_header_branch
                %755 = sbr.rel (%p753) target = $region299
              $region296: #{forward.1} parent=291 // loop_body
                %v759 = vld [vmem:[%s757] sm:%s750]
                %760 = vst [vmem:[%s758] sm:%s750] %v759
              $region297: #{forward.1} parent=291 // loop_footer
                %s756 = sadd.s32 1, %s752
              $region298: #{forward.1} parent=291 // loop_footer_branch
                %751 = sbr.rel target = $region294
              $region299: #{forward.1} parent=291 // loop_exit
                _
            $region292: #{forward.1} parent=276 // pred_fallthru
              _
          $region277: #{forward.1} parent=92 // pred_fallthru
            _
          // Predicated region
          $region278: #{forward.1} parent=92 // pred_check
            %p726 = pneg %p722
          $region279: #{forward.1} parent=92 // pred_check_branch
            %728 = sbr.rel (%p726) target = $region281
          $region280: #{forward.1} parent=92 // pred_region
            %s729 = sshllo.u32 0, 1
            loop: start=0, step=1, limit=1
            $region282: #{forward.1} parent=280 // loop_pre_header
              _
            $region283: #{forward.1} parent=280 // loop_header
              %s731 = sphi 0, %s735
              %p732 = scmp.ge.s32.totalorder %s731, 1
              %s736 = sphi %s718, %s718
              %s737 = sphi %s719, %s719
            $region284: #{forward.1} parent=280 // loop_header_branch
              %734 = sbr.rel (%p732) target = $region288
            $region285: #{forward.1} parent=280 // loop_body
              %v738 = vld [vmem:[%s736] sm:%s729]
              %739 = vst [vmem:[%s737] sm:%s729] %v738
            $region286: #{forward.1} parent=280 // loop_footer
              %s735 = sadd.s32 1, %s731
            $region287: #{forward.1} parent=280 // loop_footer_branch
              %730 = sbr.rel target = $region283
            $region288: #{forward.1} parent=280 // loop_exit
              _
          $region281: #{forward.1} parent=92 // pred_fallthru
            _
          // Predicated region
          $region300: #{forward.1} parent=92 // pred_check
            _
          $region301: #{forward.1} parent=92 // pred_check_branch
            %763 = sbr.rel (0) target = $region303
          $region302: #{forward.1} parent=92 // pred_region
            %764 = vsyncadd %s720, 16
          $region303: #{forward.1} parent=92 // pred_fallthru
            _
          %s765 = scalar_lea.vmem %s2, %s437
          %s766 = scalar_lea.vmem [#allocation2], 7
          %s767 = scalar_lea.sflag [#allocation4], 7
          %p769 = scmp.lt.u32.totalorder 1, 8
          %p770 = pneg %p769
          // Predicated region
          $region304: #{forward.1} parent=92 // pred_check
            _
          $region305: #{forward.1} parent=92 // pred_check_branch
            %772 = sbr.rel (%p769) target = $region307
          $region306: #{forward.1} parent=92 // pred_region
            %s787 = sand.u32 1, 7
            %p788 = scmp.eq.s32.totalorder %s787, 0
            %p789 = pneg %p788
            // Predicated region
            $region319: #{forward.1} parent=306 // pred_check
              _
            $region320: #{forward.1} parent=306 // pred_check_branch
              %791 = sbr.rel (%p788) target = $region322
            $region321: #{forward.1} parent=306 // pred_region
              %s792 = sand.u32 1, 7
              %s793 = ssub.s32 1, %s792
              %s794 = scalar_lea.vmem %s765, %s793
              %s795 = ssub.s32 1, %s792
              %s796 = scalar_lea.vmem %s766, %s795 [#allocation2]
              %s797 = sshllo.u32 0, %s792
              loop: start=0, step=1, limit=1
              $region323: #{forward.1} parent=321 // loop_pre_header
                _
              $region324: #{forward.1} parent=321 // loop_header
                %s799 = sphi 0, %s803
                %p800 = scmp.ge.s32.totalorder %s799, 1
                %s804 = sphi %s794, %s794
                %s805 = sphi %s796, %s796
              $region325: #{forward.1} parent=321 // loop_header_branch
                %802 = sbr.rel (%p800) target = $region329
              $region326: #{forward.1} parent=321 // loop_body
                %v806 = vld [vmem:[%s804] sm:%s797]
                %807 = vst [vmem:[%s805] sm:%s797] %v806
              $region327: #{forward.1} parent=321 // loop_footer
                %s803 = sadd.s32 1, %s799
              $region328: #{forward.1} parent=321 // loop_footer_branch
                %798 = sbr.rel target = $region324
              $region329: #{forward.1} parent=321 // loop_exit
                _
            $region322: #{forward.1} parent=306 // pred_fallthru
              _
          $region307: #{forward.1} parent=92 // pred_fallthru
            _
          // Predicated region
          $region308: #{forward.1} parent=92 // pred_check
            %p773 = pneg %p769
          $region309: #{forward.1} parent=92 // pred_check_branch
            %775 = sbr.rel (%p773) target = $region311
          $region310: #{forward.1} parent=92 // pred_region
            %s776 = sshllo.u32 0, 1
            loop: start=0, step=1, limit=1
            $region312: #{forward.1} parent=310 // loop_pre_header
              _
            $region313: #{forward.1} parent=310 // loop_header
              %s778 = sphi 0, %s782
              %p779 = scmp.ge.s32.totalorder %s778, 1
              %s783 = sphi %s765, %s765
              %s784 = sphi %s766, %s766
            $region314: #{forward.1} parent=310 // loop_header_branch
              %781 = sbr.rel (%p779) target = $region318
            $region315: #{forward.1} parent=310 // loop_body
              %v785 = vld [vmem:[%s783] sm:%s776]
              %786 = vst [vmem:[%s784] sm:%s776] %v785
            $region316: #{forward.1} parent=310 // loop_footer
              %s782 = sadd.s32 1, %s778
            $region317: #{forward.1} parent=310 // loop_footer_branch
              %777 = sbr.rel target = $region313
            $region318: #{forward.1} parent=310 // loop_exit
              _
          $region311: #{forward.1} parent=92 // pred_fallthru
            _
          // Predicated region
          $region330: #{forward.1} parent=92 // pred_check
            _
          $region331: #{forward.1} parent=92 // pred_check_branch
            %810 = sbr.rel (0) target = $region333
          $region332: #{forward.1} parent=92 // pred_region
            %811 = vsyncadd %s767, 16
          $region333: #{forward.1} parent=92 // pred_fallthru
            _
          %s812 = smul.u32 1, 1
          %s813 = sshll.u32 %s812, 4
          %814 = dma.done [#allocation4], %s813
          %s815 = sshll.u32 %s812, 4
          %816 = dma.done %s485, %s815
          %s817 = sshll.u32 %s812, 4
          %818 = dma.done %s532, %s817
          %s819 = sshll.u32 %s812, 4
          %820 = dma.done %s579, %s819
          %s821 = sshll.u32 %s812, 4
          %822 = dma.done %s626, %s821
          %s823 = sshll.u32 %s812, 4
          %824 = dma.done %s673, %s823
          %s825 = sshll.u32 %s812, 4
          %826 = dma.done %s720, %s825
          %s827 = sshll.u32 %s812, 4
          %828 = dma.done %s767, %s827
          %v829 = vld [vmem:[#allocation2] sm:$0xff]
          %v830 = vpack.c.bf16 %v829, %v829
          %v831 = vld [vmem:[%s1] sm:$0xff]
          %v832 = vld [vmem:[%s3] sm:$0xff]
          %v833 = vld [vmem:[%s3 + $0x8] sm:$0xf]
          %v834 = vld [vmem:[%s3 + $0xc] sm:$0xff]
          %v835 = vld [vmem:[%s3 + $0x14] sm:$0xf]
          %v836 = vld [vmem:[%s3 + $0x18] sm:$0xff]
          %v837 = vld [vmem:[%s3 + $0x20] sm:$0xf]
          %v838 = vld [vmem:[%s3 + $0x24] sm:$0xff]
          %v839 = vld [vmem:[%s3 + $0x2c] sm:$0xf]
          %v840 = vld [vmem:[%s3 + $0x30] sm:$0xff]
          %v841 = vld [vmem:[%s3 + $0x38] sm:$0xf]
          %v842 = vld [vmem:[%s3 + $0x3c] sm:$0xff]
          %v843 = vld [vmem:[%s3 + $0x44] sm:$0xf]
          %v844 = vld [vmem:[%s3 + $0x48] sm:$0xff]
          %v845 = vld [vmem:[%s3 + $0x50] sm:$0xf]
          %v846 = vld [vmem:[%s3 + $0x54] sm:$0xff]
          %v847 = vld [vmem:[%s3 + $0x5c] sm:$0xf]
          %v848 = vld [vmem:[%s3 + $0x60] sm:$0xff]
          %v849 = vld [vmem:[%s3 + $0x68] sm:$0xf]
          %v850 = vld [vmem:[%s3 + $0x6c] sm:$0xff]
          %v851 = vld [vmem:[%s3 + $0x74] sm:$0xf]
          %v852 = vld [vmem:[%s3 + $0x78] sm:$0xff]
          %v853 = vld [vmem:[%s3 + $0x80] sm:$0xf]
          %v854 = vld [vmem:[%s3 + $0x84] sm:$0xff]
          %v855 = vld [vmem:[%s3 + $0x8c] sm:$0xf]
          %v856 = vld [vmem:[%s3 + $0x90] sm:$0xff]
          %v857 = vld [vmem:[%s3 + $0x98] sm:$0xf]
          %v858 = vld [vmem:[%s3 + $0x9c] sm:$0xff]
          %v859 = vld [vmem:[%s3 + $0xa4] sm:$0xf]
          %v860 = vld [vmem:[%s3 + $0xa8] sm:$0xff]
          %v861 = vld [vmem:[%s3 + $0xb0] sm:$0xf]
          %v862 = vld [vmem:[%s3 + $0xb4] sm:$0xff]
          %v863 = vld [vmem:[%s3 + $0xbc] sm:$0xf]
          %v864 = vld [vmem:[%s4] sm:$0x7]
          %v866 = vlaneseq
          %v867 = vshrl.u32 %v866, 7
          %v868 = vsub.s32 0, %v867
          %v869 = vrot.slane %v864, %v868
          %v870 = vlaneseq
          %v871 = vshrl.u32 %v870, 7
          %v872 = vsub.s32 1, %v871
          %v873 = vrot.slane %v864, %v872
          %v874 = vlaneseq
          %v875 = vshrl.u32 %v874, 7
          %v876 = vsub.s32 2, %v875
          %v877 = vrot.slane %v864, %v876
          %v913 = vunpack.c.l.b16 %v832
          %v914 = vunpack.c.h.b16 %v832
          %v915 = vunpack.c.l.b16 %v833
          %v916 = vunpack.c.l.b16 %v834
          %v917 = vunpack.c.h.b16 %v834
          %v918 = vunpack.c.l.b16 %v835
          %v919 = vunpack.c.l.b16 %v836
          %v920 = vunpack.c.h.b16 %v836
          %v921 = vunpack.c.l.b16 %v837
          %v922 = vunpack.c.l.b16 %v838
          %v923 = vunpack.c.h.b16 %v838
          %v924 = vunpack.c.l.b16 %v839
          %v925 = vunpack.c.l.b16 %v840
          %v926 = vunpack.c.h.b16 %v840
          %v927 = vunpack.c.l.b16 %v841
          %v928 = vunpack.c.l.b16 %v842
          %v929 = vunpack.c.h.b16 %v842
          %v930 = vunpack.c.l.b16 %v843
          %v931 = vunpack.c.l.b16 %v844
          %v932 = vunpack.c.h.b16 %v844
          %v933 = vunpack.c.l.b16 %v845
          %v934 = vunpack.c.l.b16 %v846
          %v935 = vunpack.c.h.b16 %v846
          %v936 = vunpack.c.l.b16 %v847
          %v937 = vunpack.c.l.b16 %v848
          %v938 = vunpack.c.h.b16 %v848
          %v939 = vunpack.c.l.b16 %v849
          %v940 = vunpack.c.l.b16 %v850
          %v941 = vunpack.c.h.b16 %v850
          %v942 = vunpack.c.l.b16 %v851
          %v943 = vunpack.c.l.b16 %v852
          %v944 = vunpack.c.h.b16 %v852
          %v945 = vunpack.c.l.b16 %v853
          %v946 = vunpack.c.l.b16 %v854
          %v947 = vunpack.c.h.b16 %v854
          %v948 = vunpack.c.l.b16 %v855
          %v949 = vunpack.c.l.b16 %v856
          %v950 = vunpack.c.h.b16 %v856
          %v951 = vunpack.c.l.b16 %v857
          %v952 = vunpack.c.l.b16 %v858
          %v953 = vunpack.c.h.b16 %v858
          %v954 = vunpack.c.l.b16 %v859
          %v955 = vunpack.c.l.b16 %v860
          %v956 = vunpack.c.h.b16 %v860
          %v957 = vunpack.c.l.b16 %v861
          %v958 = vunpack.c.l.b16 %v862
          %v959 = vunpack.c.h.b16 %v862
          %v960 = vunpack.c.l.b16 %v863
          %v961 = vpack.c.b16 %v916, %v913
          %v962 = vpack.c.b16 %v917, %v914
          %v963 = vpack.c.b16 %v918, %v915
          %v964 = vpack.c.b16 %v922, %v919
          %v965 = vpack.c.b16 %v923, %v920
          %v966 = vpack.c.b16 %v924, %v921
          %v967 = vpack.c.b16 %v928, %v925
          %v968 = vpack.c.b16 %v929, %v926
          %v969 = vpack.c.b16 %v930, %v927
          %v970 = vpack.c.b16 %v934, %v931
          %v971 = vpack.c.b16 %v935, %v932
          %v972 = vpack.c.b16 %v936, %v933
          %v973 = vpack.c.b16 %v940, %v937
          %v974 = vpack.c.b16 %v941, %v938
          %v975 = vpack.c.b16 %v942, %v939
          %v976 = vpack.c.b16 %v946, %v943
          %v977 = vpack.c.b16 %v947, %v944
          %v978 = vpack.c.b16 %v948, %v945
          %v979 = vpack.c.b16 %v952, %v949
          %v980 = vpack.c.b16 %v953, %v950
          %v981 = vpack.c.b16 %v954, %v951
          %v982 = vpack.c.b16 %v958, %v955
          %v983 = vpack.c.b16 %v959, %v956
          %v984 = vpack.c.b16 %v960, %v957
          %1009 = vmatprep.subr.bf16.mxu0 %v962
          %1010 = vmatpush1.bf16.msra.mxu0 %v961
          %1011 = vmatprep.subr.bf16.mxu0 %v965
          %1012 = vmatpush1.bf16.msra.mxu0 %v964
          %1013 = vmatprep.subr.bf16.mxu0 %v968
          %1014 = vmatpush1.bf16.msra.mxu0 %v967
          %1015 = vmatprep.subr.bf16.mxu0 %v971
          %1016 = vmatpush1.bf16.msra.mxu0 %v970
          %1017 = vmatprep.subr.bf16.mxu0 %v974
          %1018 = vmatpush1.bf16.msra.mxu0 %v973
          %1019 = vmatprep.subr.bf16.mxu0 %v977
          %1020 = vmatpush1.bf16.msra.mxu0 %v976
          %1021 = vmatprep.subr.bf16.mxu0 %v980
          %1022 = vmatpush1.bf16.msra.mxu0 %v979
          %1023 = vmatprep.subr.bf16.mxu0 %v983
          %1024 = vmatpush1.bf16.msra.mxu0 %v982
          %1025 = vmatprep.subr.bf16.mxu0 0
          %1026 = vmatpush1.bf16.msra.mxu0 0
          %1027 = vmatprep.subr.bf16.mxu0 0
          %1028 = vmatpush1.bf16.msra.mxu0 0
          %1029 = vmatprep.subr.bf16.mxu0 0
          %1030 = vmatpush1.bf16.msra.mxu0 0
          %1031 = vmatprep.subr.bf16.mxu0 0
          %1032 = vmatpush1.bf16.msra.mxu0 0
          %1033 = vmatprep.subr.bf16.mxu0 0
          %1034 = vmatpush1.bf16.msra.mxu0 0
          %1035 = vmatprep.subr.bf16.mxu0 0
          %1036 = vmatpush1.bf16.msra.mxu0 0
          %1037 = vmatprep.subr.bf16.mxu0 0
          %1038 = vmatpush1.bf16.msra.mxu0 0
          %1039 = vmatprep.subr.bf16.mxu0 0
          %1040 = vmatpush1.bf16.msra.mxu0 0
          %1041 = vmatprep.mubr.bf16.mxu0 0
          %1042 = vmatmul.mubr.bf16.gmra.mrb[0].mxu0 %v830
          %v1043 = vpop.f32.mrb[0].mxu0
          %v1044 = vadd.f32 %v869, %v1043
          %v1045 = vpop.f32.mrb[0].mxu0
          %v1046 = vadd.f32 %v873, %v1045
          %v1047 = vpop.f32.mrb[0].mxu0
          %v1048 = vpop.f32.mrb[0].mxu0
          %1049 = vdwg.mxu0
          %1050 = vmatprep.subr.bf16.mxu0 0
          %1051 = vmatpush1.bf16.msra.mxu0 %v963
          %1052 = vmatprep.subr.bf16.mxu0 0
          %1053 = vmatpush1.bf16.msra.mxu0 %v966
          %1054 = vmatprep.subr.bf16.mxu0 0
          %1055 = vmatpush1.bf16.msra.mxu0 %v969
          %1056 = vmatprep.subr.bf16.mxu0 0
          %1057 = vmatpush1.bf16.msra.mxu0 %v972
          %1058 = vmatprep.subr.bf16.mxu0 0
          %1059 = vmatpush1.bf16.msra.mxu0 %v975
          %1060 = vmatprep.subr.bf16.mxu0 0
          %1061 = vmatpush1.bf16.msra.mxu0 %v978
          %1062 = vmatprep.subr.bf16.mxu0 0
          %1063 = vmatpush1.bf16.msra.mxu0 %v981
          %1064 = vmatprep.subr.bf16.mxu0 0
          %1065 = vmatpush1.bf16.msra.mxu0 %v984
          %1066 = vmatprep.subr.bf16.mxu0 0
          %1067 = vmatpush1.bf16.msra.mxu0 0
          %1068 = vmatprep.subr.bf16.mxu0 0
          %1069 = vmatpush1.bf16.msra.mxu0 0
          %1070 = vmatprep.subr.bf16.mxu0 0
          %1071 = vmatpush1.bf16.msra.mxu0 0
          %1072 = vmatprep.subr.bf16.mxu0 0
          %1073 = vmatpush1.bf16.msra.mxu0 0
          %1074 = vmatprep.subr.bf16.mxu0 0
          %1075 = vmatpush1.bf16.msra.mxu0 0
          %1076 = vmatprep.subr.bf16.mxu0 0
          %1077 = vmatpush1.bf16.msra.mxu0 0
          %1078 = vmatprep.subr.bf16.mxu0 0
          %1079 = vmatpush1.bf16.msra.mxu0 0
          %1080 = vmatprep.subr.bf16.mxu0 0
          %1081 = vmatpush1.bf16.msra.mxu0 0
          %1082 = vmatprep.mubr.bf16.mxu0 0
          %1083 = vmatmul.mubr.bf16.gmra.mrb[0].mxu0 %v830
          %v1084 = vpop.f32.mrb[0].mxu0
          %v1085 = vadd.f32 %v877, %v1084
          %v1086 = vpop.f32.mrb[0].mxu0
          %v1087 = vpop.f32.mrb[0].mxu0
          %v1088 = vpop.f32.mrb[0].mxu0
          %1089 = vdwg.mxu0
          %v1090 = vpack.c.bf16 %v831, %v831
          %v1091 = vld [vmem:[%s5] sm:$0xff]
          %v1092 = vld [vmem:[%s5 + $0x8] sm:$0xf]
          %v1093 = vld [vmem:[%s5 + $0xc] sm:$0xff]
          %v1094 = vld [vmem:[%s5 + $0x14] sm:$0xf]
          %v1095 = vld [vmem:[%s5 + $0x18] sm:$0xff]
          %v1096 = vld [vmem:[%s5 + $0x20] sm:$0xf]
          %v1097 = vld [vmem:[%s5 + $0x24] sm:$0xff]
          %v1098 = vld [vmem:[%s5 + $0x2c] sm:$0xf]
          %v1099 = vld [vmem:[%s5 + $0x30] sm:$0xff]
          %v1100 = vld [vmem:[%s5 + $0x38] sm:$0xf]
          %v1101 = vld [vmem:[%s5 + $0x3c] sm:$0xff]
          %v1102 = vld [vmem:[%s5 + $0x44] sm:$0xf]
          %v1103 = vld [vmem:[%s5 + $0x48] sm:$0xff]
          %v1104 = vld [vmem:[%s5 + $0x50] sm:$0xf]
          %v1105 = vld [vmem:[%s5 + $0x54] sm:$0xff]
          %v1106 = vld [vmem:[%s5 + $0x5c] sm:$0xf]
          %v1107 = vld [vmem:[%s5 + $0x60] sm:$0xff]
          %v1108 = vld [vmem:[%s5 + $0x68] sm:$0xf]
          %v1109 = vld [vmem:[%s5 + $0x6c] sm:$0xff]
          %v1110 = vld [vmem:[%s5 + $0x74] sm:$0xf]
          %v1111 = vld [vmem:[%s5 + $0x78] sm:$0xff]
          %v1112 = vld [vmem:[%s5 + $0x80] sm:$0xf]
          %v1113 = vld [vmem:[%s5 + $0x84] sm:$0xff]
          %v1114 = vld [vmem:[%s5 + $0x8c] sm:$0xf]
          %v1115 = vld [vmem:[%s5 + $0x90] sm:$0xff]
          %v1116 = vld [vmem:[%s5 + $0x98] sm:$0xf]
          %v1117 = vld [vmem:[%s5 + $0x9c] sm:$0xff]
          %v1118 = vld [vmem:[%s5 + $0xa4] sm:$0xf]
          %v1119 = vld [vmem:[%s5 + $0xa8] sm:$0xff]
          %v1120 = vld [vmem:[%s5 + $0xb0] sm:$0xf]
          %v1121 = vld [vmem:[%s5 + $0xb4] sm:$0xff]
          %v1122 = vld [vmem:[%s5 + $0xbc] sm:$0xf]
          %v1123 = vld [vmem:[%s6] sm:$0x7]
          %v1125 = vlaneseq
          %v1126 = vshrl.u32 %v1125, 7
          %v1127 = vsub.s32 0, %v1126
          %v1128 = vrot.slane %v1123, %v1127
          %v1129 = vlaneseq
          %v1130 = vshrl.u32 %v1129, 7
          %v1131 = vsub.s32 1, %v1130
          %v1132 = vrot.slane %v1123, %v1131
          %v1133 = vlaneseq
          %v1134 = vshrl.u32 %v1133, 7
          %v1135 = vsub.s32 2, %v1134
          %v1136 = vrot.slane %v1123, %v1135
          %v1172 = vunpack.c.l.b16 %v1091
          %v1173 = vunpack.c.h.b16 %v1091
          %v1174 = vunpack.c.l.b16 %v1092
          %v1175 = vunpack.c.l.b16 %v1093
          %v1176 = vunpack.c.h.b16 %v1093
          %v1177 = vunpack.c.l.b16 %v1094
          %v1178 = vunpack.c.l.b16 %v1095
          %v1179 = vunpack.c.h.b16 %v1095
          %v1180 = vunpack.c.l.b16 %v1096
          %v1181 = vunpack.c.l.b16 %v1097
          %v1182 = vunpack.c.h.b16 %v1097
          %v1183 = vunpack.c.l.b16 %v1098
          %v1184 = vunpack.c.l.b16 %v1099
          %v1185 = vunpack.c.h.b16 %v1099
          %v1186 = vunpack.c.l.b16 %v1100
          %v1187 = vunpack.c.l.b16 %v1101
          %v1188 = vunpack.c.h.b16 %v1101
          %v1189 = vunpack.c.l.b16 %v1102
          %v1190 = vunpack.c.l.b16 %v1103
          %v1191 = vunpack.c.h.b16 %v1103
          %v1192 = vunpack.c.l.b16 %v1104
          %v1193 = vunpack.c.l.b16 %v1105
          %v1194 = vunpack.c.h.b16 %v1105
          %v1195 = vunpack.c.l.b16 %v1106
          %v1196 = vunpack.c.l.b16 %v1107
          %v1197 = vunpack.c.h.b16 %v1107
          %v1198 = vunpack.c.l.b16 %v1108
          %v1199 = vunpack.c.l.b16 %v1109
          %v1200 = vunpack.c.h.b16 %v1109
          %v1201 = vunpack.c.l.b16 %v1110
          %v1202 = vunpack.c.l.b16 %v1111
          %v1203 = vunpack.c.h.b16 %v1111
          %v1204 = vunpack.c.l.b16 %v1112
          %v1205 = vunpack.c.l.b16 %v1113
          %v1206 = vunpack.c.h.b16 %v1113
          %v1207 = vunpack.c.l.b16 %v1114
          %v1208 = vunpack.c.l.b16 %v1115
          %v1209 = vunpack.c.h.b16 %v1115
          %v1210 = vunpack.c.l.b16 %v1116
          %v1211 = vunpack.c.l.b16 %v1117
          %v1212 = vunpack.c.h.b16 %v1117
          %v1213 = vunpack.c.l.b16 %v1118
          %v1214 = vunpack.c.l.b16 %v1119
          %v1215 = vunpack.c.h.b16 %v1119
          %v1216 = vunpack.c.l.b16 %v1120
          %v1217 = vunpack.c.l.b16 %v1121
          %v1218 = vunpack.c.h.b16 %v1121
          %v1219 = vunpack.c.l.b16 %v1122
          %v1220 = vpack.c.b16 %v1175, %v1172
          %v1221 = vpack.c.b16 %v1176, %v1173
          %v1222 = vpack.c.b16 %v1177, %v1174
          %v1223 = vpack.c.b16 %v1181, %v1178
          %v1224 = vpack.c.b16 %v1182, %v1179
          %v1225 = vpack.c.b16 %v1183, %v1180
          %v1226 = vpack.c.b16 %v1187, %v1184
          %v1227 = vpack.c.b16 %v1188, %v1185
          %v1228 = vpack.c.b16 %v1189, %v1186
          %v1229 = vpack.c.b16 %v1193, %v1190
          %v1230 = vpack.c.b16 %v1194, %v1191
          %v1231 = vpack.c.b16 %v1195, %v1192
          %v1232 = vpack.c.b16 %v1199, %v1196
          %v1233 = vpack.c.b16 %v1200, %v1197
          %v1234 = vpack.c.b16 %v1201, %v1198
          %v1235 = vpack.c.b16 %v1205, %v1202
          %v1236 = vpack.c.b16 %v1206, %v1203
          %v1237 = vpack.c.b16 %v1207, %v1204
          %v1238 = vpack.c.b16 %v1211, %v1208
          %v1239 = vpack.c.b16 %v1212, %v1209
          %v1240 = vpack.c.b16 %v1213, %v1210
          %v1241 = vpack.c.b16 %v1217, %v1214
          %v1242 = vpack.c.b16 %v1218, %v1215
          %v1243 = vpack.c.b16 %v1219, %v1216
          %1268 = vmatprep.subr.bf16.mxu0 %v1221
          %1269 = vmatpush1.bf16.msra.mxu0 %v1220
          %1270 = vmatprep.subr.bf16.mxu0 %v1224
          %1271 = vmatpush1.bf16.msra.mxu0 %v1223
          %1272 = vmatprep.subr.bf16.mxu0 %v1227
          %1273 = vmatpush1.bf16.msra.mxu0 %v1226
          %1274 = vmatprep.subr.bf16.mxu0 %v1230
          %1275 = vmatpush1.bf16.msra.mxu0 %v1229
          %1276 = vmatprep.subr.bf16.mxu0 %v1233
          %1277 = vmatpush1.bf16.msra.mxu0 %v1232
          %1278 = vmatprep.subr.bf16.mxu0 %v1236
          %1279 = vmatpush1.bf16.msra.mxu0 %v1235
          %1280 = vmatprep.subr.bf16.mxu0 %v1239
          %1281 = vmatpush1.bf16.msra.mxu0 %v1238
          %1282 = vmatprep.subr.bf16.mxu0 %v1242
          %1283 = vmatpush1.bf16.msra.mxu0 %v1241
          %1284 = vmatprep.subr.bf16.mxu0 0
          %1285 = vmatpush1.bf16.msra.mxu0 0
          %1286 = vmatprep.subr.bf16.mxu0 0
          %1287 = vmatpush1.bf16.msra.mxu0 0
          %1288 = vmatprep.subr.bf16.mxu0 0
          %1289 = vmatpush1.bf16.msra.mxu0 0
          %1290 = vmatprep.subr.bf16.mxu0 0
          %1291 = vmatpush1.bf16.msra.mxu0 0
          %1292 = vmatprep.subr.bf16.mxu0 0
          %1293 = vmatpush1.bf16.msra.mxu0 0
          %1294 = vmatprep.subr.bf16.mxu0 0
          %1295 = vmatpush1.bf16.msra.mxu0 0
          %1296 = vmatprep.subr.bf16.mxu0 0
          %1297 = vmatpush1.bf16.msra.mxu0 0
          %1298 = vmatprep.subr.bf16.mxu0 0
          %1299 = vmatpush1.bf16.msra.mxu0 0
          %1300 = vmatprep.mubr.bf16.mxu0 0
          %1301 = vmatmul.mubr.bf16.gmra.mrb[0].mxu0 %v1090
          %v1302 = vpop.f32.mrb[0].mxu0
          %v1303 = vadd.f32 %v1128, %v1302
          %v1304 = vpop.f32.mrb[0].mxu0
          %v1305 = vadd.f32 %v1132, %v1304
          %v1306 = vpop.f32.mrb[0].mxu0
          %v1307 = vpop.f32.mrb[0].mxu0
          %1308 = vdwg.mxu0
          %1309 = vmatprep.subr.bf16.mxu0 0
          %1310 = vmatpush1.bf16.msra.mxu0 %v1222
          %1311 = vmatprep.subr.bf16.mxu0 0
          %1312 = vmatpush1.bf16.msra.mxu0 %v1225
          %1313 = vmatprep.subr.bf16.mxu0 0
          %1314 = vmatpush1.bf16.msra.mxu0 %v1228
          %1315 = vmatprep.subr.bf16.mxu0 0
          %1316 = vmatpush1.bf16.msra.mxu0 %v1231
          %1317 = vmatprep.subr.bf16.mxu0 0
          %1318 = vmatpush1.bf16.msra.mxu0 %v1234
          %1319 = vmatprep.subr.bf16.mxu0 0
          %1320 = vmatpush1.bf16.msra.mxu0 %v1237
          %1321 = vmatprep.subr.bf16.mxu0 0
          %1322 = vmatpush1.bf16.msra.mxu0 %v1240
          %1323 = vmatprep.subr.bf16.mxu0 0
          %1324 = vmatpush1.bf16.msra.mxu0 %v1243
          %1325 = vmatprep.subr.bf16.mxu0 0
          %1326 = vmatpush1.bf16.msra.mxu0 0
          %1327 = vmatprep.subr.bf16.mxu0 0
          %1328 = vmatpush1.bf16.msra.mxu0 0
          %1329 = vmatprep.subr.bf16.mxu0 0
          %1330 = vmatpush1.bf16.msra.mxu0 0
          %1331 = vmatprep.subr.bf16.mxu0 0
          %1332 = vmatpush1.bf16.msra.mxu0 0
          %1333 = vmatprep.subr.bf16.mxu0 0
          %1334 = vmatpush1.bf16.msra.mxu0 0
          %1335 = vmatprep.subr.bf16.mxu0 0
          %1336 = vmatpush1.bf16.msra.mxu0 0
          %1337 = vmatprep.subr.bf16.mxu0 0
          %1338 = vmatpush1.bf16.msra.mxu0 0
          %1339 = vmatprep.subr.bf16.mxu0 0
          %1340 = vmatpush1.bf16.msra.mxu0 0
          %1341 = vmatprep.mubr.bf16.mxu0 0
          %1342 = vmatmul.mubr.bf16.gmra.mrb[0].mxu0 %v1090
          %v1343 = vpop.f32.mrb[0].mxu0
          %v1344 = vadd.f32 %v1136, %v1343
          %v1345 = vpop.f32.mrb[0].mxu0
          %v1346 = vpop.f32.mrb[0].mxu0
          %v1347 = vpop.f32.mrb[0].mxu0
          %1348 = vdwg.mxu0
          %v1349 = vadd.f32 %v1044, %v1303
          %v1350 = vxor.u32 %v1349, 2147483648
          %v1351 = vmul.f32 %v1350, 1.442695
          %v1352 = vpow.pop %v1351
          %v1353 = vadd.f32 %v1352, 1.0
          %v1354 = vrcp.pop %v1353
          %v1355 = vmul.f32 1.0, %v1354
          %v1356 = vadd.f32 %v1046, %v1305
          %v1357 = vxor.u32 %v1356, 2147483648
          %v1358 = vmul.f32 %v1357, 1.442695
          %v1359 = vpow.pop %v1358
          %v1360 = vadd.f32 %v1359, 1.0
          %v1361 = vrcp.pop %v1360
          %v1362 = vmul.f32 1.0, %v1361
          %v1363 = vmul.f32 %v1355, %v1344
          %v1364 = vadd.f32 %v1085, %v1363
          %v1365 = vtanh.pop %v1364
          %v1366 = vsub.f32 1.0, %v1362
          %v1367 = vmul.f32 %v1366, %v1365
          %v1368 = vmul.f32 %v1362, %v831
          %v1369 = vadd.f32 %v1367, %v1368
          %1370 = vst [vmem:[#allocation3] sm:$0xff] %v1369
        $region93: #{forward.1} parent=84 // pred_fallthru
          _
        %v1371 = vld [vmem:[#allocation3] sm:$0xff]
        %1372 = vst [vmem:[%s10] sm:$0xff] %v1371
        %v1373 = vld [vmem:[#allocation3] sm:$0xff]
        %v1374 = vpack.c.bf16 %v1373, %v1373
        %v1375 = vld [vmem:[%s385] sm:$0xf]
        %v1376 = vld [vmem:[%s385 + $0x4] sm:$0xf]
        %v1377 = vld [vmem:[%s385 + $0x8] sm:$0xf]
        %v1378 = vld [vmem:[%s385 + $0xc] sm:$0xf]
        %v1379 = vld [vmem:[%s385 + $0x10] sm:$0xf]
        %v1380 = vld [vmem:[%s385 + $0x14] sm:$0xf]
        %v1381 = vld [vmem:[%s385 + $0x18] sm:$0xf]
        %v1382 = vld [vmem:[%s385 + $0x1c] sm:$0xf]
        %v1383 = vld [vmem:[%s385 + $0x20] sm:$0xf]
        %v1384 = vld [vmem:[%s385 + $0x24] sm:$0xf]
        %v1385 = vld [vmem:[%s385 + $0x28] sm:$0xf]
        %v1386 = vld [vmem:[%s385 + $0x2c] sm:$0xf]
        %v1387 = vld [vmem:[%s385 + $0x30] sm:$0xf]
        %v1388 = vld [vmem:[%s385 + $0x34] sm:$0xf]
        %v1389 = vld [vmem:[%s385 + $0x38] sm:$0xf]
        %v1390 = vld [vmem:[%s385 + $0x3c] sm:$0xf]
        %v1391 = vld [vmem:[%s420] sm:$0x1]
        %v1393 = vlaneseq
        %v1394 = vshrl.u32 %v1393, 7
        %v1395 = vsub.s32 0, %v1394
        %v1396 = vrot.slane %v1391, %v1395
        %v1414 = vunpack.c.l.b16 %v1375
        %v1415 = vunpack.c.l.b16 %v1376
        %v1416 = vunpack.c.l.b16 %v1377
        %v1417 = vunpack.c.l.b16 %v1378
        %v1418 = vunpack.c.l.b16 %v1379
        %v1419 = vunpack.c.l.b16 %v1380
        %v1420 = vunpack.c.l.b16 %v1381
        %v1421 = vunpack.c.l.b16 %v1382
        %v1422 = vunpack.c.l.b16 %v1383
        %v1423 = vunpack.c.l.b16 %v1384
        %v1424 = vunpack.c.l.b16 %v1385
        %v1425 = vunpack.c.l.b16 %v1386
        %v1426 = vunpack.c.l.b16 %v1387
        %v1427 = vunpack.c.l.b16 %v1388
        %v1428 = vunpack.c.l.b16 %v1389
        %v1429 = vunpack.c.l.b16 %v1390
        %v1430 = vpack.c.b16 %v1415, %v1414
        %v1431 = vpack.c.b16 %v1417, %v1416
        %v1432 = vpack.c.b16 %v1419, %v1418
        %v1433 = vpack.c.b16 %v1421, %v1420
        %v1434 = vpack.c.b16 %v1423, %v1422
        %v1435 = vpack.c.b16 %v1425, %v1424
        %v1436 = vpack.c.b16 %v1427, %v1426
        %v1437 = vpack.c.b16 %v1429, %v1428
        %1446 = vmatprep.subr.bf16.mxu0 0
        %1447 = vmatpush1.bf16.msra.mxu0 %v1430
        %1448 = vmatprep.subr.bf16.mxu0 0
        %1449 = vmatpush1.bf16.msra.mxu0 %v1431
        %1450 = vmatprep.subr.bf16.mxu0 0
        %1451 = vmatpush1.bf16.msra.mxu0 %v1432
        %1452 = vmatprep.subr.bf16.mxu0 0
        %1453 = vmatpush1.bf16.msra.mxu0 %v1433
        %1454 = vmatprep.subr.bf16.mxu0 0
        %1455 = vmatpush1.bf16.msra.mxu0 %v1434
        %1456 = vmatprep.subr.bf16.mxu0 0
        %1457 = vmatpush1.bf16.msra.mxu0 %v1435
        %1458 = vmatprep.subr.bf16.mxu0 0
        %1459 = vmatpush1.bf16.msra.mxu0 %v1436
        %1460 = vmatprep.subr.bf16.mxu0 0
        %1461 = vmatpush1.bf16.msra.mxu0 %v1437
        %1462 = vmatprep.subr.bf16.mxu0 0
        %1463 = vmatpush1.bf16.msra.mxu0 0
        %1464 = vmatprep.subr.bf16.mxu0 0
        %1465 = vmatpush1.bf16.msra.mxu0 0
        %1466 = vmatprep.subr.bf16.mxu0 0
        %1467 = vmatpush1.bf16.msra.mxu0 0
        %1468 = vmatprep.subr.bf16.mxu0 0
        %1469 = vmatpush1.bf16.msra.mxu0 0
        %1470 = vmatprep.subr.bf16.mxu0 0
        %1471 = vmatpush1.bf16.msra.mxu0 0
        %1472 = vmatprep.subr.bf16.mxu0 0
        %1473 = vmatpush1.bf16.msra.mxu0 0
        %1474 = vmatprep.subr.bf16.mxu0 0
        %1475 = vmatpush1.bf16.msra.mxu0 0
        %1476 = vmatprep.subr.bf16.mxu0 0
        %1477 = vmatpush1.bf16.msra.mxu0 0
        %1478 = vmatprep.mubr.bf16.mxu0 0
        %1479 = vmatmul.mubr.bf16.gmra.mrb[0].mxu0 %v1374
        %v1480 = vpop.f32.mrb[0].mxu0
        %v1481 = vadd.f32 %v1396, %v1480
        %v1482 = vpop.f32.mrb[0].mxu0
        %v1483 = vpop.f32.mrb[0].mxu0
        %v1484 = vpop.f32.mrb[0].mxu0
        %1485 = vdwg.mxu0
        %1486 = vst [vmem:[%s424] sm:$0xff] %v1481
        %p1487 = scmp.lt.s32.totalorder %s28, 1
        %s1488 = scalar_select %p1487, %s28, 1
        %s1489 = smul.addr %s1488, 8
        %s1490 = scalar_lea.vmem %s9, %s1489
        // Predicated region
        $region334: #{forward.1} parent=84 // pred_check
          %p1491 = pneg %p203
        $region335: #{forward.1} parent=84 // pred_check_branch
          %1493 = sbr.rel (%p1491) target = $region337
        $region336: #{forward.1} parent=84 // pred_region
          _
        $region337: #{forward.1} parent=84 // pred_fallthru
          _
        // Predicated region
        $region338: #{forward.1} parent=84 // pred_check
          %p1494 = pneg %p224
        $region339: #{forward.1} parent=84 // pred_check_branch
          %1496 = sbr.rel (%p1494) target = $region341
        $region340: #{forward.1} parent=84 // pred_region
          _
        $region341: #{forward.1} parent=84 // pred_fallthru
          _
        // Predicated region
        $region342: #{forward.1} parent=84 // pred_check
          %p1497 = pneg %p224
        $region343: #{forward.1} parent=84 // pred_check_branch
          %1499 = sbr.rel (%p1497) target = $region345
        $region344: #{forward.1} parent=84 // pred_region
          _
        $region345: #{forward.1} parent=84 // pred_fallthru
          _
      $region85: #{forward.1} parent=5 // pred_fallthru
        _
      %p1500 = scmp.le.s32.totalorder 2, %s23
      // Predicated region
      $region346: #{forward.1} parent=5 // pred_check
        %p1501 = pneg %p1500
      $region347: #{forward.1} parent=5 // pred_check_branch
        %1503 = sbr.rel (%p1501) target = $region349
      $region348: #{forward.1} parent=5 // pred_region
        %s1504 = ssub.s32 %s23, 2
        // Predicated region
        $region350: #{forward.1} parent=348 // pred_check
          %p1505 = pneg %p209
        $region351: #{forward.1} parent=348 // pred_check_branch
          %1507 = sbr.rel (%p1505) target = $region353
        $region352: #{forward.1} parent=348 // pred_region
          %p1508 = scmp.lt.s32.totalorder %s29, 1
          %s1509 = scalar_select %p1508, %s29, 1
          %s1510 = smul.addr %s1509, 8
          %s1511 = scalar_lea.vmem %s9, %s1510
        $region353: #{forward.1} parent=348 // pred_fallthru
          _
      $region349: #{forward.1} parent=5 // pred_fallthru
        _
    $region6: #{forward.1} parent=1 // loop_footer
      %s27 = sadd.s32 1, %s23
    $region7: #{forward.1} parent=1 // loop_footer_branch
      %22 = sbr.rel target = $region3
    $region8: #{forward.1} parent=1 // loop_exit
      _
  %1512 = vsyncmov [#allocation4]
  %s1513 = vpop.sfrf %1512
  %p1514 = scmp.eq.s32.totalorder %s1513, 0
  %p1515 = pneg %p1514
  %1517 = shalt.err (%p1515)
  %s1518 = scalar_lea.sflag [#allocation4], 1
  %1519 = vsyncmov %s1518
  %s1520 = vpop.sfrf %1519
  %p1521 = scmp.eq.s32.totalorder %s1520, 0
  %p1522 = pneg %p1521
  %1524 = shalt.err (%p1522)
  %s1525 = scalar_lea.sflag [#allocation4], 2
  %1526 = vsyncmov %s1525
  %s1527 = vpop.sfrf %1526
  %p1528 = scmp.eq.s32.totalorder %s1527, 0
  %p1529 = pneg %p1528
  %1531 = shalt.err (%p1529)
  %s1532 = scalar_lea.sflag [#allocation4], 3
  %1533 = vsyncmov %s1532
  %s1534 = vpop.sfrf %1533
  %p1535 = scmp.eq.s32.totalorder %s1534, 0
  %p1536 = pneg %p1535
  %1538 = shalt.err (%p1536)
  %s1539 = scalar_lea.sflag [#allocation4], 4
  %1540 = vsyncmov %s1539
  %s1541 = vpop.sfrf %1540
  %p1542 = scmp.eq.s32.totalorder %s1541, 0
  %p1543 = pneg %p1542
  %1545 = shalt.err (%p1543)
  %s1546 = scalar_lea.sflag [#allocation4], 5
  %1547 = vsyncmov %s1546
  %s1548 = vpop.sfrf %1547
  %p1549 = scmp.eq.s32.totalorder %s1548, 0
  %p1550 = pneg %p1549
  %1552 = shalt.err (%p1550)
  %s1553 = scalar_lea.sflag [#allocation4], 6
  %1554 = vsyncmov %s1553
  %s1555 = vpop.sfrf %1554
  %p1556 = scmp.eq.s32.totalorder %s1555, 0
  %p1557 = pneg %p1556
  %1559 = shalt.err (%p1557)
  %s1560 = scalar_lea.sflag [#allocation4], 7
  %1561 = vsyncmov %s1560
  %s1562 = vpop.sfrf %1561
  %p1563 = scmp.eq.s32.totalorder %s1562, 0
  %p1564 = pneg %p1563
  %1566 = shalt.err (%p1564)

</llo_original>
